<compile_context>
chip_gen: v6e
topology: v6e:2x2x1
jax: 0.10.0
libtpu: 0.0.40
codegen_flags: <defaults>
</compile_context>

<pallas_src>
import functools
import math

import jax
import jax.numpy as jnp
from jax.experimental import pallas as pl
from jax.experimental.pallas import tpu as pltpu


def _gnn_kernel(a_in_ref, a_out_ref, h_ref,
                w_h_all_ref, b_h_all_ref,
                w_ih_in_ref, w_ih_out_ref, b_i_all_ref,
                out_ref, *, step: int, compute_dtype):
    TB, N, H = h_ref.shape
    M = TB * N

    # ---- hoist all loop-invariant loads / slices out of the step loop -------
    w_h_all = w_h_all_ref[...].astype(compute_dtype)     # (H, 5H)
    b_h_all = b_h_all_ref[...]                           # (1, 5H)  f32
    w_ih_in = w_ih_in_ref[...].astype(compute_dtype)     # (H, 3H)
    w_ih_out = w_ih_out_ref[...].astype(compute_dtype)   # (H, 3H)
    b_i_all = b_i_all_ref[...]                           # (1, 5H)  f32
    b_iah = b_i_all[:, :H]
    b_oah = b_i_all[:, H:2 * H]
    b_ih = b_i_all[:, 2 * H:]

    a_in = a_in_ref[...].astype(compute_dtype)           # (TB, N, N)
    a_out = a_out_ref[...].astype(compute_dtype)         # (TB, N, N)

    # Flatten sessions into one big row dimension for the MXU (N % 8 == 0 so
    # this reshape is a free re-view of the sublane tiles).
    h = h_ref[...].reshape(M, H)                         # (TB*N, H)  f32

    def cell(h):
        # One fused (TB*N, H) @ (H, 5H) projection: edge_in | edge_out | gh.
        proj = jnp.dot(h.astype(compute_dtype), w_h_all,
                       preferred_element_type=jnp.float32) + b_h_all
        edge_in = proj[:, :H].reshape(TB, N, H)
        edge_out = proj[:, H:2 * H].reshape(TB, N, H)
        gh = proj[:, 2 * H:]                             # (M, 3H)

        # Batched graph propagation over the TB sessions of this block.
        input_in = jnp.einsum(
            'bnm,bmh->bnh', a_in, edge_in.astype(compute_dtype),
            preferred_element_type=jnp.float32).reshape(M, H) + b_iah
        input_out = jnp.einsum(
            'bnm,bmh->bnh', a_out, edge_out.astype(compute_dtype),
            preferred_element_type=jnp.float32).reshape(M, H) + b_oah

        # gi = [input_in, input_out] @ w_ih^T + b_ih, done as two matmuls to
        # avoid a lane-dim concat in VMEM.
        gi = (jnp.dot(input_in.astype(compute_dtype), w_ih_in,
                      preferred_element_type=jnp.float32)
              + jnp.dot(input_out.astype(compute_dtype), w_ih_out,
                        preferred_element_type=jnp.float32)
              + b_ih)                                    # (M, 3H)

        i_r, i_i, i_n = gi[:, :H], gi[:, H:2 * H], gi[:, 2 * H:]
        h_r, h_i, h_n = gh[:, :H], gh[:, H:2 * H], gh[:, 2 * H:]

        resetgate = jax.nn.sigmoid(i_r + h_r)
        inputgate = jax.nn.sigmoid(i_i + h_i)
        newgate = jnp.tanh(i_n + resetgate * h_n)
        return newgate + inputgate * (h - newgate)

    if step <= 4:
        for _ in range(step):                            # unrolled at trace time
            h = cell(h)
    else:
        # bound vreg live ranges for long recurrences
        h = jax.lax.fori_loop(0, step, lambda _, hh: cell(hh), h)

    out_ref[...] = h.reshape(TB, N, H).astype(out_ref.dtype)


def _choose_block_batch(B, N, target_rows=256, max_rows=2048):
    """Largest batch-per-block that keeps blocks VMEM-friendly, preferring
    TB*N >= target_rows so the MXU M dimension is well fed."""
    divisors = [d for d in range(1, B + 1) if B % d == 0]
    tb = None
    for d in divisors:
        if d * N >= target_rows:
            tb = d
            break
    if tb is None:
        fitting = [d for d in divisors if d * N <= max_rows] or [1]
        tb = max(fitting)
    # Prefer >= 2 grid blocks (megacore / v7x dual TensorCore) when that does
    # not drop the block below the MXU-feeding target.
    if tb == B and B % 2 == 0 and (B // 2) * N >= target_rows:
        tb = B // 2
    return tb


def session_graph_forward(hidden, A, params, *, step=1,
                          compute_dtype=jnp.float32):
    """Pallas implementation of SessionGraph.forward(inputs, A)."""
    B, N, H = hidden.shape
    assert A.shape == (B, N, 2 * N)
    assert N % 8 == 0, "N must be a multiple of 8 (sublane) for free flattening"

    # Split A outside the kernel (free layout plumbing; avoids in-kernel
    # lane-dim slicing of a sub-128-lane array).
    A_in = A[:, :, :N]
    A_out = A[:, :, N:2 * N]

    # Fuse the three h-projections into one (H, 5H) weight / (1, 5H) bias.
    w_h_all = jnp.concatenate([params["w_edge_in"].T,
                               params["w_edge_out"].T,
                               params["w_hh"].T], axis=1)           # (H, 5H)
    b_h_all = jnp.concatenate([params["b_edge_in"],
                               params["b_edge_out"],
                               params["b_hh"]]).reshape(1, 5 * H)
    # Pre-transpose / pre-split w_ih so the kernel never slices it.
    w_ih_t = params["w_ih"].T                                       # (2H, 3H)
    w_ih_in = w_ih_t[:H]                                            # (H, 3H)
    w_ih_out = w_ih_t[H:]                                           # (H, 3H)
    # Pack the remaining biases into one row: [b_iah | b_oah | b_ih].
    b_i_all = jnp.concatenate([params["b_iah"],
                               params["b_oah"],
                               params["b_ih"]]).reshape(1, 5 * H)

    TB = _choose_block_batch(B, N)
    grid = (B // TB,)

    batch_spec = lambda shape: pl.BlockSpec(shape, lambda g: (g, 0, 0))
    const_spec = lambda shape: pl.BlockSpec(shape,
                                            lambda g: tuple(0 for _ in shape))

    kernel = functools.partial(_gnn_kernel, step=step,
                               compute_dtype=compute_dtype)

    return pl.pallas_call(
        kernel,
        out_shape=jax.ShapeDtypeStruct((B, N, H), jnp.float32),
        grid_spec=pltpu.PrefetchScalarGridSpec(
            num_scalar_prefetch=0,
            grid=grid,
            in_specs=[
                batch_spec((TB, N, N)),        # A_in
                batch_spec((TB, N, N)),        # A_out
                batch_spec((TB, N, H)),        # hidden
                const_spec((H, 5 * H)),        # [w_edge_in|w_edge_out|w_hh]^T
                const_spec((1, 5 * H)),        # [b_edge_in|b_edge_out|b_hh]
                const_spec((H, 3 * H)),        # w_ih^T rows for input_in
                const_spec((H, 3 * H)),        # w_ih^T rows for input_out
                const_spec((1, 5 * H)),        # [b_iah|b_oah|b_ih]
            ],
            out_specs=batch_spec((TB, N, H)),
        ),
        compiler_params=pltpu.CompilerParams(
            dimension_semantics=("parallel",)),
    )(A_in, A_out, hidden, w_h_all, b_h_all, w_ih_in, w_ih_out, b_i_all)


def session_graph_forward_ref(hidden, A, params, *, step=1):
    """Pure-JAX reference mirroring the PyTorch GNNCell math."""
    B, N, H = hidden.shape
    h = hidden
    for _ in range(step):
        edge_in = h @ params["w_edge_in"].T + params["b_edge_in"]
        edge_out = h @ params["w_edge_out"].T + params["b_edge_out"]
        input_in = jnp.matmul(A[:, :, :N], edge_in) + params["b_iah"]
        input_out = jnp.matmul(A[:, :, N:2 * N], edge_out) + params["b_oah"]
        inp = jnp.concatenate([input_in, input_out], axis=2)
        gi = inp @ params["w_ih"].T + params["b_ih"]
        gh = h @ params["w_hh"].T + params["b_hh"]
        i_r, i_i, i_n = jnp.split(gi, 3, axis=2)
        h_r, h_i, h_n = jnp.split(gh, 3, axis=2)
        resetgate = jax.nn.sigmoid(i_r + h_r)
        inputgate = jax.nn.sigmoid(i_i + h_i)
        newgate = jnp.tanh(i_n + resetgate * h_n)
        h = newgate + inputgate * (h - newgate)
    return h


def init_params(key, hidden_size):
    """Deterministic uniform(-stdv, stdv) init, matching reset_parameters()."""
    H = hidden_size
    stdv = 1.0 / math.sqrt(H)
    shapes = {
        "w_ih": (3 * H, 2 * H),
        "w_hh": (3 * H, H),
        "b_ih": (3 * H,),
        "b_hh": (3 * H,),
        "b_iah": (H,),
        "b_oah": (H,),
        "w_edge_in": (H, H),
        "b_edge_in": (H,),
        "w_edge_out": (H, H),
        "b_edge_out": (H,),
    }
    params = {}
    keys = jax.random.split(key, len(shapes))
    for k, (name, shape) in zip(keys, shapes.items()):
        params[name] = jax.random.uniform(
            k, shape, jnp.float32, minval=-stdv, maxval=stdv)
    return params


if __name__ == "__main__":
    # Small shapes consistent with SessionGraph.forward(inputs, A):
    #   hidden (inputs): (batch, n_items, hidden_size)
    #   A:               (batch, n_items, 2 * n_items)
    B, N, H, STEP = 4, 8, 32, 2

    key = jax.random.PRNGKey(0)
    k_param, k_h, k_a = jax.random.split(key, 3)

    params = init_params(k_param, H)
    hidden = jax.random.normal(k_h, (B, N, H), jnp.float32)
    # row-normalized non-negative "adjacency" like the SR-GNN preprocessing
    A_raw = jax.random.uniform(k_a, (B, N, 2 * N), jnp.float32)
    A = A_raw / jnp.maximum(A_raw.sum(axis=2, keepdims=True), 1e-6)

    # f32 matmuls by default so numerics match the reference exactly;
    # pass compute_dtype=jnp.bfloat16 on v6e/v7x for ~2x MXU throughput.
    out = session_graph_forward(hidden, A, params, step=STEP)
    out = jax.block_until_ready(out)

    ref = session_graph_forward_ref(hidden, A, params, step=STEP)
    assert out.shape == (B, N, H)
    assert jnp.allclose(out, ref, atol=1e-5, rtol=1e-5), "mismatch vs reference"

    print("KERNEL_OK")
</pallas_src>

<mosaic_0001>
module attributes {stable_mosaic.version = 11 : i64} {
  func.func @_gnn_kernel(%arg0: i32, %arg1: memref<4x8x8xf32, #tpu.memory_space<vmem>>, %arg2: memref<4x8x8xf32, #tpu.memory_space<vmem>>, %arg3: memref<4x8x32xf32, #tpu.memory_space<vmem>>, %arg4: memref<32x160xf32, #tpu.memory_space<vmem>>, %arg5: memref<1x160xf32, #tpu.memory_space<vmem>>, %arg6: memref<32x96xf32, #tpu.memory_space<vmem>>, %arg7: memref<32x96xf32, #tpu.memory_space<vmem>>, %arg8: memref<1x160xf32, #tpu.memory_space<vmem>>, %arg9: memref<4x8x32xf32, #tpu.memory_space<vmem>>) attributes {dimension_semantics = [#tpu.dimension_semantics<parallel>], iteration_bounds = array<i64: 1>, scalar_prefetch = 0 : i64, scratch_operands = 0 : i64, tpu.core_type = #tpu.core_type<tc>, window_params = [{transform_indices = @transform_0, window_bounds = array<i64: 4, 8, 8>}, {transform_indices = @transform_1, window_bounds = array<i64: 4, 8, 8>}, {transform_indices = @transform_2, window_bounds = array<i64: 4, 8, 32>}, {pipeline_mode = #tpu.pipeline_mode<synchronous>, transform_indices = @transform_3, window_bounds = array<i64: 32, 160>}, {pipeline_mode = #tpu.pipeline_mode<synchronous>, transform_indices = @transform_4, window_bounds = array<i64: 1, 160>}, {pipeline_mode = #tpu.pipeline_mode<synchronous>, transform_indices = @transform_5, window_bounds = array<i64: 32, 96>}, {pipeline_mode = #tpu.pipeline_mode<synchronous>, transform_indices = @transform_6, window_bounds = array<i64: 32, 96>}, {pipeline_mode = #tpu.pipeline_mode<synchronous>, transform_indices = @transform_7, window_bounds = array<i64: 1, 160>}, {transform_indices = @transform_8, window_bounds = array<i64: 4, 8, 32>}]} {
    %c0 = arith.constant 0 : index
    %c0_0 = arith.constant 0 : index
    %0 = vector.load %arg4[%c0, %c0_0] : memref<32x160xf32, #tpu.memory_space<vmem>>, vector<32x160xf32>
    %c0_1 = arith.constant 0 : index
    %c0_2 = arith.constant 0 : index
    %1 = vector.load %arg5[%c0_1, %c0_2] : memref<1x160xf32, #tpu.memory_space<vmem>>, vector<1x160xf32>
    %c0_3 = arith.constant 0 : index
    %c0_4 = arith.constant 0 : index
    %2 = vector.load %arg6[%c0_3, %c0_4] : memref<32x96xf32, #tpu.memory_space<vmem>>, vector<32x96xf32>
    %c0_5 = arith.constant 0 : index
    %c0_6 = arith.constant 0 : index
    %3 = vector.load %arg7[%c0_5, %c0_6] : memref<32x96xf32, #tpu.memory_space<vmem>>, vector<32x96xf32>
    %c0_7 = arith.constant 0 : index
    %c0_8 = arith.constant 0 : index
    %4 = vector.load %arg8[%c0_7, %c0_8] : memref<1x160xf32, #tpu.memory_space<vmem>>, vector<1x160xf32>
    %5 = vector.extract_strided_slice %4 {offsets = [0, 0], sizes = [1, 32], strides = [1, 1]} : vector<1x160xf32> to vector<1x32xf32>
    %6 = vector.extract_strided_slice %4 {offsets = [0, 32], sizes = [1, 32], strides = [1, 1]} : vector<1x160xf32> to vector<1x32xf32>
    %7 = vector.extract_strided_slice %4 {offsets = [0, 64], sizes = [1, 96], strides = [1, 1]} : vector<1x160xf32> to vector<1x96xf32>
    %c0_9 = arith.constant 0 : index
    %c0_10 = arith.constant 0 : index
    %c0_11 = arith.constant 0 : index
    %8 = vector.load %arg1[%c0_9, %c0_10, %c0_11] : memref<4x8x8xf32, #tpu.memory_space<vmem>>, vector<4x8x8xf32>
    %c0_12 = arith.constant 0 : index
    %c0_13 = arith.constant 0 : index
    %c0_14 = arith.constant 0 : index
    %9 = vector.load %arg2[%c0_12, %c0_13, %c0_14] : memref<4x8x8xf32, #tpu.memory_space<vmem>>, vector<4x8x8xf32>
    %c0_15 = arith.constant 0 : index
    %c0_16 = arith.constant 0 : index
    %c0_17 = arith.constant 0 : index
    %10 = vector.load %arg3[%c0_15, %c0_16, %c0_17] : memref<4x8x32xf32, #tpu.memory_space<vmem>>, vector<4x8x32xf32>
    %11 = vector.shape_cast %10 : vector<4x8x32xf32> to vector<32x32xf32>
    %cst = arith.constant dense<0.000000e+00> : vector<32x160xf32>
    %12 = tpu.matmul %11, %0, %cst {dimension_numbers = #tpu.dot_dimension_numbers<[1], [0], [0], [1], [0, 0, 1, 1], [], []>} : vector<32x32xf32>, vector<32x160xf32>, vector<32x160xf32> -> vector<32x160xf32>
    %13 = vector.broadcast %1 : vector<1x160xf32> to vector<32x160xf32>
    %14 = arith.addf %12, %13 : vector<32x160xf32>
    %15 = vector.extract_strided_slice %14 {offsets = [0, 0], sizes = [32, 32], strides = [1, 1]} : vector<32x160xf32> to vector<32x32xf32>
    %16 = vector.shape_cast %15 : vector<32x32xf32> to vector<4x8x32xf32>
    %17 = vector.extract_strided_slice %14 {offsets = [0, 32], sizes = [32, 32], strides = [1, 1]} : vector<32x160xf32> to vector<32x32xf32>
    %18 = vector.shape_cast %17 : vector<32x32xf32> to vector<4x8x32xf32>
    %19 = vector.extract_strided_slice %14 {offsets = [0, 64], sizes = [32, 96], strides = [1, 1]} : vector<32x160xf32> to vector<32x96xf32>
    "tpu.trace_start"() <{level = 10 : i32, message = "bnm,bmh->bnh"}> : () -> ()
    %cst_18 = arith.constant dense<0.000000e+00> : vector<4x8x32xf32>
    %20 = tpu.matmul %8, %16, %cst_18 {dimension_numbers = #tpu.dot_dimension_numbers<[2], [1], [1], [2], [0, 0, 0, 1, 1, 2], [0], [0]>} : vector<4x8x8xf32>, vector<4x8x32xf32>, vector<4x8x32xf32> -> vector<4x8x32xf32>
    "tpu.trace_stop"() : () -> ()
    %21 = vector.shape_cast %20 : vector<4x8x32xf32> to vector<32x32xf32>
    %22 = vector.broadcast %5 : vector<1x32xf32> to vector<32x32xf32>
    %23 = arith.addf %21, %22 : vector<32x32xf32>
    "tpu.trace_start"() <{level = 10 : i32, message = "bnm,bmh->bnh"}> : () -> ()
    %cst_19 = arith.constant dense<0.000000e+00> : vector<4x8x32xf32>
    %24 = tpu.matmul %9, %18, %cst_19 {dimension_numbers = #tpu.dot_dimension_numbers<[2], [1], [1], [2], [0, 0, 0, 1, 1, 2], [0], [0]>} : vector<4x8x8xf32>, vector<4x8x32xf32>, vector<4x8x32xf32> -> vector<4x8x32xf32>
    "tpu.trace_stop"() : () -> ()
    %25 = vector.shape_cast %24 : vector<4x8x32xf32> to vector<32x32xf32>
    %26 = vector.broadcast %6 : vector<1x32xf32> to vector<32x32xf32>
    %27 = arith.addf %25, %26 : vector<32x32xf32>
    %cst_20 = arith.constant dense<0.000000e+00> : vector<32x96xf32>
    %28 = tpu.matmul %23, %2, %cst_20 {dimension_numbers = #tpu.dot_dimension_numbers<[1], [0], [0], [1], [0, 0, 1, 1], [], []>} : vector<32x32xf32>, vector<32x96xf32>, vector<32x96xf32> -> vector<32x96xf32>
    %cst_21 = arith.constant dense<0.000000e+00> : vector<32x96xf32>
    %29 = tpu.matmul %27, %3, %cst_21 {dimension_numbers = #tpu.dot_dimension_numbers<[1], [0], [0], [1], [0, 0, 1, 1], [], []>} : vector<32x32xf32>, vector<32x96xf32>, vector<32x96xf32> -> vector<32x96xf32>
    %30 = arith.addf %28, %29 : vector<32x96xf32>
    %31 = vector.broadcast %7 : vector<1x96xf32> to vector<32x96xf32>
    %32 = arith.addf %30, %31 : vector<32x96xf32>
    %33 = vector.extract_strided_slice %32 {offsets = [0, 0], sizes = [32, 32], strides = [1, 1]} : vector<32x96xf32> to vector<32x32xf32>
    %34 = vector.extract_strided_slice %32 {offsets = [0, 32], sizes = [32, 32], strides = [1, 1]} : vector<32x96xf32> to vector<32x32xf32>
    %35 = vector.extract_strided_slice %32 {offsets = [0, 64], sizes = [32, 32], strides = [1, 1]} : vector<32x96xf32> to vector<32x32xf32>
    %36 = vector.extract_strided_slice %19 {offsets = [0, 0], sizes = [32, 32], strides = [1, 1]} : vector<32x96xf32> to vector<32x32xf32>
    %37 = vector.extract_strided_slice %19 {offsets = [0, 32], sizes = [32, 32], strides = [1, 1]} : vector<32x96xf32> to vector<32x32xf32>
    %38 = vector.extract_strided_slice %19 {offsets = [0, 64], sizes = [32, 32], strides = [1, 1]} : vector<32x96xf32> to vector<32x32xf32>
    %39 = arith.addf %33, %36 : vector<32x32xf32>
    %40 = arith.negf %39 : vector<32x32xf32>
    %41 = math.exp %40 : vector<32x32xf32>
    %cst_22 = arith.constant 1.000000e+00 : f32
    %42 = vector.broadcast %cst_22 : f32 to vector<32x32xf32>
    %43 = arith.addf %42, %41 : vector<32x32xf32>
    %44 = arith.divf %42, %43 : vector<32x32xf32>
    %45 = arith.addf %34, %37 : vector<32x32xf32>
    %46 = arith.negf %45 : vector<32x32xf32>
    %47 = math.exp %46 : vector<32x32xf32>
    %cst_23 = arith.constant 1.000000e+00 : f32
    %48 = vector.broadcast %cst_23 : f32 to vector<32x32xf32>
    %49 = arith.addf %48, %47 : vector<32x32xf32>
    %50 = arith.divf %48, %49 : vector<32x32xf32>
    %51 = arith.mulf %44, %38 : vector<32x32xf32>
    %52 = arith.addf %35, %51 : vector<32x32xf32>
    %53 = math.tanh %52 : vector<32x32xf32>
    %54 = arith.subf %11, %53 : vector<32x32xf32>
    %55 = arith.mulf %50, %54 : vector<32x32xf32>
    %56 = arith.addf %53, %55 : vector<32x32xf32>
    %cst_24 = arith.constant dense<0.000000e+00> : vector<32x160xf32>
    %57 = tpu.matmul %56, %0, %cst_24 {dimension_numbers = #tpu.dot_dimension_numbers<[1], [0], [0], [1], [0, 0, 1, 1], [], []>} : vector<32x32xf32>, vector<32x160xf32>, vector<32x160xf32> -> vector<32x160xf32>
    %58 = vector.broadcast %1 : vector<1x160xf32> to vector<32x160xf32>
    %59 = arith.addf %57, %58 : vector<32x160xf32>
    %60 = vector.extract_strided_slice %59 {offsets = [0, 0], sizes = [32, 32], strides = [1, 1]} : vector<32x160xf32> to vector<32x32xf32>
    %61 = vector.shape_cast %60 : vector<32x32xf32> to vector<4x8x32xf32>
    %62 = vector.extract_strided_slice %59 {offsets = [0, 32], sizes = [32, 32], strides = [1, 1]} : vector<32x160xf32> to vector<32x32xf32>
    %63 = vector.shape_cast %62 : vector<32x32xf32> to vector<4x8x32xf32>
    %64 = vector.extract_strided_slice %59 {offsets = [0, 64], sizes = [32, 96], strides = [1, 1]} : vector<32x160xf32> to vector<32x96xf32>
    "tpu.trace_start"() <{level = 10 : i32, message = "bnm,bmh->bnh"}> : () -> ()
    %cst_25 = arith.constant dense<0.000000e+00> : vector<4x8x32xf32>
    %65 = tpu.matmul %8, %61, %cst_25 {dimension_numbers = #tpu.dot_dimension_numbers<[2], [1], [1], [2], [0, 0, 0, 1, 1, 2], [0], [0]>} : vector<4x8x8xf32>, vector<4x8x32xf32>, vector<4x8x32xf32> -> vector<4x8x32xf32>
    "tpu.trace_stop"() : () -> ()
    %66 = vector.shape_cast %65 : vector<4x8x32xf32> to vector<32x32xf32>
    %67 = vector.broadcast %5 : vector<1x32xf32> to vector<32x32xf32>
    %68 = arith.addf %66, %67 : vector<32x32xf32>
    "tpu.trace_start"() <{level = 10 : i32, message = "bnm,bmh->bnh"}> : () -> ()
    %cst_26 = arith.constant dense<0.000000e+00> : vector<4x8x32xf32>
    %69 = tpu.matmul %9, %63, %cst_26 {dimension_numbers = #tpu.dot_dimension_numbers<[2], [1], [1], [2], [0, 0, 0, 1, 1, 2], [0], [0]>} : vector<4x8x8xf32>, vector<4x8x32xf32>, vector<4x8x32xf32> -> vector<4x8x32xf32>
    "tpu.trace_stop"() : () -> ()
    %70 = vector.shape_cast %69 : vector<4x8x32xf32> to vector<32x32xf32>
    %71 = vector.broadcast %6 : vector<1x32xf32> to vector<32x32xf32>
    %72 = arith.addf %70, %71 : vector<32x32xf32>
    %cst_27 = arith.constant dense<0.000000e+00> : vector<32x96xf32>
    %73 = tpu.matmul %68, %2, %cst_27 {dimension_numbers = #tpu.dot_dimension_numbers<[1], [0], [0], [1], [0, 0, 1, 1], [], []>} : vector<32x32xf32>, vector<32x96xf32>, vector<32x96xf32> -> vector<32x96xf32>
    %cst_28 = arith.constant dense<0.000000e+00> : vector<32x96xf32>
    %74 = tpu.matmul %72, %3, %cst_28 {dimension_numbers = #tpu.dot_dimension_numbers<[1], [0], [0], [1], [0, 0, 1, 1], [], []>} : vector<32x32xf32>, vector<32x96xf32>, vector<32x96xf32> -> vector<32x96xf32>
    %75 = arith.addf %73, %74 : vector<32x96xf32>
    %76 = vector.broadcast %7 : vector<1x96xf32> to vector<32x96xf32>
    %77 = arith.addf %75, %76 : vector<32x96xf32>
    %78 = vector.extract_strided_slice %77 {offsets = [0, 0], sizes = [32, 32], strides = [1, 1]} : vector<32x96xf32> to vector<32x32xf32>
    %79 = vector.extract_strided_slice %77 {offsets = [0, 32], sizes = [32, 32], strides = [1, 1]} : vector<32x96xf32> to vector<32x32xf32>
    %80 = vector.extract_strided_slice %77 {offsets = [0, 64], sizes = [32, 32], strides = [1, 1]} : vector<32x96xf32> to vector<32x32xf32>
    %81 = vector.extract_strided_slice %64 {offsets = [0, 0], sizes = [32, 32], strides = [1, 1]} : vector<32x96xf32> to vector<32x32xf32>
    %82 = vector.extract_strided_slice %64 {offsets = [0, 32], sizes = [32, 32], strides = [1, 1]} : vector<32x96xf32> to vector<32x32xf32>
    %83 = vector.extract_strided_slice %64 {offsets = [0, 64], sizes = [32, 32], strides = [1, 1]} : vector<32x96xf32> to vector<32x32xf32>
    %84 = arith.addf %78, %81 : vector<32x32xf32>
    %85 = arith.negf %84 : vector<32x32xf32>
    %86 = math.exp %85 : vector<32x32xf32>
    %cst_29 = arith.constant 1.000000e+00 : f32
    %87 = vector.broadcast %cst_29 : f32 to vector<32x32xf32>
    %88 = arith.addf %87, %86 : vector<32x32xf32>
    %89 = arith.divf %87, %88 : vector<32x32xf32>
    %90 = arith.addf %79, %82 : vector<32x32xf32>
    %91 = arith.negf %90 : vector<32x32xf32>
    %92 = math.exp %91 : vector<32x32xf32>
    %cst_30 = arith.constant 1.000000e+00 : f32
    %93 = vector.broadcast %cst_30 : f32 to vector<32x32xf32>
    %94 = arith.addf %93, %92 : vector<32x32xf32>
    %95 = arith.divf %93, %94 : vector<32x32xf32>
    %96 = arith.mulf %89, %83 : vector<32x32xf32>
    %97 = arith.addf %80, %96 : vector<32x32xf32>
    %98 = math.tanh %97 : vector<32x32xf32>
    %99 = arith.subf %56, %98 : vector<32x32xf32>
    %100 = arith.mulf %95, %99 : vector<32x32xf32>
    %101 = arith.addf %98, %100 : vector<32x32xf32>
    %102 = vector.shape_cast %101 : vector<32x32xf32> to vector<4x8x32xf32>
    %c0_31 = arith.constant 0 : index
    %c0_32 = arith.constant 0 : index
    %c0_33 = arith.constant 0 : index
    %103 = vector.load %arg9[%c0_31, %c0_32, %c0_33] : memref<4x8x32xf32, #tpu.memory_space<vmem>>, vector<4x8x32xf32>
    tpu.vector_store %arg9[%c0_31, %c0_32, %c0_33], %102 {strides = array<i32>} : memref<4x8x32xf32, #tpu.memory_space<vmem>>, vector<4x8x32xf32>,
    return
  }
  func.func @transform_0(%arg0: i32) -> (i32, i32, i32) {
    %c0_i32 = arith.constant 0 : i32
    %c0_i32_0 = arith.constant 0 : i32
    %c0_i32_1 = arith.constant 0 : i32
    return %arg0, %c0_i32, %c0_i32_0 : i32, i32, i32
  }
  func.func @transform_1(%arg0: i32) -> (i32, i32, i32) {
    %c0_i32 = arith.constant 0 : i32
    %c0_i32_0 = arith.constant 0 : i32
    %c0_i32_1 = arith.constant 0 : i32
    return %arg0, %c0_i32, %c0_i32_0 : i32, i32, i32
  }
  func.func @transform_2(%arg0: i32) -> (i32, i32, i32) {
    %c0_i32 = arith.constant 0 : i32
    %c0_i32_0 = arith.constant 0 : i32
    %c0_i32_1 = arith.constant 0 : i32
    return %arg0, %c0_i32, %c0_i32_0 : i32, i32, i32
  }
  func.func @transform_3(%arg0: i32) -> (i32, i32) {
    %c0_i32 = arith.constant 0 : i32
    %c0_i32_0 = arith.constant 0 : i32
    %c0_i32_1 = arith.constant 0 : i32
    return %c0_i32, %c0_i32_0 : i32, i32
  }
  func.func @transform_4(%arg0: i32) -> (i32, i32) {
    %c0_i32 = arith.constant 0 : i32
    %c0_i32_0 = arith.constant 0 : i32
    %c0_i32_1 = arith.constant 0 : i32
    return %c0_i32, %c0_i32_0 : i32, i32
  }
  func.func @transform_5(%arg0: i32) -> (i32, i32) {
    %c0_i32 = arith.constant 0 : i32
    %c0_i32_0 = arith.constant 0 : i32
    %c0_i32_1 = arith.constant 0 : i32
    return %c0_i32, %c0_i32_0 : i32, i32
  }
  func.func @transform_6(%arg0: i32) -> (i32, i32) {
    %c0_i32 = arith.constant 0 : i32
    %c0_i32_0 = arith.constant 0 : i32
    %c0_i32_1 = arith.constant 0 : i32
    return %c0_i32, %c0_i32_0 : i32, i32
  }
  func.func @transform_7(%arg0: i32) -> (i32, i32) {
    %c0_i32 = arith.constant 0 : i32
    %c0_i32_0 = arith.constant 0 : i32
    %c0_i32_1 = arith.constant 0 : i32
    return %c0_i32, %c0_i32_0 : i32, i32
  }
  func.func @transform_8(%arg0: i32) -> (i32, i32, i32) {
    %c0_i32 = arith.constant 0 : i32
    %c0_i32_0 = arith.constant 0 : i32
    %c0_i32_1 = arith.constant 0 : i32
    return %arg0, %c0_i32, %c0_i32_0 : i32, i32, i32
  }
}

</mosaic_0001>

<llo_original>
// kernel: tpu_custom_call.1
$region0: #{tpu_custom_call.1}
  #allocation0 [shape = 'u32[]', space=smem, size = 0x4, offset = 0x4, fixed_abs, tag = 'smem constant byte address 0x4 - core index']
  #allocation1 [shape = 'u32[144,128]{1,0:T(1,128)}', space=vmem, size = 0x12000, scoped, tag = 'internal scratch']
  %s0 = inlined_call_operand.hbm [shape: f32[4,8,8], index: 0, kind: input, shape index: {}]
  %s1 = inlined_call_operand.hbm [shape: f32[4,8,8], index: 1, kind: input, shape index: {}]
  %s2 = inlined_call_operand.hbm [shape: f32[4,8,32], index: 2, kind: input, shape index: {}]
  %s3 = inlined_call_operand.hbm [shape: f32[32,160], index: 3, kind: input, shape index: {}]
  %s4 = inlined_call_operand.vmem [shape: f32[1,160], index: 4, kind: input, shape index: {}]
  %s5 = inlined_call_operand.hbm [shape: f32[32,96], index: 5, kind: input, shape index: {}]
  %s6 = inlined_call_operand.hbm [shape: f32[32,96], index: 6, kind: input, shape index: {}]
  %s7 = inlined_call_operand.vmem [shape: f32[1,160], index: 7, kind: input, shape index: {}]
  %s8 = inlined_call_operand.hbm [shape: f32[4,8,32], index: 8, kind: output, shape index: {}]
  %s9 = sld [smem:[#allocation0]]
  $region66: #{tpu_custom_call.1} parent=0
    _
  %s11 = ssub.s32 1, %s9
  %s12 = scalar_select 0, %s11, %s9
  $region1: #{tpu_custom_call.1} parent=0
    #allocation2 [shape = 'u8[16384]{0}', space=vmem, size = 0x4000, scoped, tag = 'input window, operand 0, single buffered']
    #allocation3 [shape = 's32[1]{0}', space=sflag, size = 0x4, scoped, tag = 'scoped memory for tpu_custom_call.1']
    #allocation4 [shape = 's32[1]{0}', space=sflag, size = 0x4, scoped, tag = 'scoped memory for tpu_custom_call.1']
    #allocation5 [shape = 'u8[16384]{0}', space=vmem, size = 0x4000, scoped, tag = 'input window, operand 1, single buffered']
    #allocation6 [shape = 's32[1]{0}', space=sflag, size = 0x4, scoped, tag = 'scoped memory for tpu_custom_call.1']
    #allocation7 [shape = 'u8[16384]{0}', space=vmem, size = 0x4000, scoped, tag = 'input window, operand 2, single buffered']
    #allocation8 [shape = 'u8[32768]{0}', space=vmem, size = 0x8000, scoped, tag = 'input window, operand 3, single buffered']
    #allocation9 [shape = 's32[1]{0}', space=sflag, size = 0x4, scoped, tag = 'scoped memory for tpu_custom_call.1']
    #allocation10 [shape = 'u8[16384]{0}', space=vmem, size = 0x4000, scoped, tag = 'input window, operand 5, single buffered']
    #allocation11 [shape = 'u8[16384]{0}', space=vmem, size = 0x4000, scoped, tag = 'input window, operand 6, single buffered']
    #allocation12 [shape = 's32[1]{0}', space=sflag, size = 0x4, scoped, tag = 'scoped memory for tpu_custom_call.1']
    #allocation13 [shape = 'u8[16384]{0}', space=vmem, size = 0x4000, scoped, tag = 'output window, operand 0, single buffered']
    %13 = vsyncpa [#allocation3], 0
    %14 = vsyncpa [#allocation6], 0
    %15 = vsyncpa [#allocation9], 0
    %16 = vsyncpa [#allocation12], 0
    %17 = vsyncpa [#allocation4], 0
    // Predicated region
    $region2: #{tpu_custom_call.1} parent=1 // pred_check
      _
    $region3: #{tpu_custom_call.1} parent=1 // pred_check_branch
      %19 = sbr.rel (0) target = $region5
    $region4: #{tpu_custom_call.1} parent=1 // pred_region
      %s21 = ssub.s32 512, 512
      %22 = vsyncadd [#allocation3], %s21
      %s23 = sshll.u32 [#allocation2], 4
      %s24 = int_to_ptr.vmem [resolvable:$true] %s23
      %29 = dma.hbm_to_vmem [thread:$0]  %s0, 512, %s24, [#allocation3], 128, 128, 8
    $region5: #{tpu_custom_call.1} parent=1 // pred_fallthru
      _
    // Predicated region
    $region6: #{tpu_custom_call.1} parent=1 // pred_check
      _
    $region7: #{tpu_custom_call.1} parent=1 // pred_check_branch
      %31 = sbr.rel (0) target = $region9
    $region8: #{tpu_custom_call.1} parent=1 // pred_region
      %s33 = ssub.s32 512, 512
      %34 = vsyncadd [#allocation6], %s33
      %s35 = sshll.u32 [#allocation5], 4
      %s36 = int_to_ptr.vmem [resolvable:$true] %s35
      %41 = dma.hbm_to_vmem [thread:$0]  %s1, 512, %s36, [#allocation6], 128, 128, 8
    $region9: #{tpu_custom_call.1} parent=1 // pred_fallthru
      _
    // Predicated region
    $region10: #{tpu_custom_call.1} parent=1 // pred_check
      _
    $region11: #{tpu_custom_call.1} parent=1 // pred_check_branch
      %43 = sbr.rel (0) target = $region13
    $region12: #{tpu_custom_call.1} parent=1 // pred_region
      %s45 = ssub.s32 512, 512
      %46 = vsyncadd [#allocation6], %s45
      %s47 = sshll.u32 [#allocation7], 4
      %s48 = int_to_ptr.vmem [resolvable:$true] %s47
      %53 = dma.hbm_to_vmem [thread:$0]  %s2, 512, %s48, [#allocation6], 128, 128, 8
    $region13: #{tpu_custom_call.1} parent=1 // pred_fallthru
      _
    // Predicated region
    $region14: #{tpu_custom_call.1} parent=1 // pred_check
      _
    $region15: #{tpu_custom_call.1} parent=1 // pred_check_branch
      %55 = sbr.rel (0) target = $region17
    $region16: #{tpu_custom_call.1} parent=1 // pred_region
      %s57 = ssub.s32 1024, 1024
      %58 = vsyncadd [#allocation9], %s57
      %s59 = sshll.u32 [#allocation8], 4
      %s60 = int_to_ptr.vmem [resolvable:$true] %s59
      %65 = dma.hbm_to_vmem [thread:$0]  %s3, 1024, %s60, [#allocation9], 256, 256, 16
    $region17: #{tpu_custom_call.1} parent=1 // pred_fallthru
      _
    // Predicated region
    $region18: #{tpu_custom_call.1} parent=1 // pred_check
      _
    $region19: #{tpu_custom_call.1} parent=1 // pred_check_branch
      %67 = sbr.rel (0) target = $region21
    $region20: #{tpu_custom_call.1} parent=1 // pred_region
      _
    $region21: #{tpu_custom_call.1} parent=1 // pred_fallthru
      _
    // Predicated region
    $region22: #{tpu_custom_call.1} parent=1 // pred_check
      _
    $region23: #{tpu_custom_call.1} parent=1 // pred_check_branch
      %69 = sbr.rel (0) target = $region25
    $region24: #{tpu_custom_call.1} parent=1 // pred_region
      %s71 = ssub.s32 512, 512
      %72 = vsyncadd [#allocation9], %s71
      %s73 = sshll.u32 [#allocation10], 4
      %s74 = int_to_ptr.vmem [resolvable:$true] %s73
      %79 = dma.hbm_to_vmem [thread:$0]  %s5, 512, %s74, [#allocation9], 128, 128, 8
    $region25: #{tpu_custom_call.1} parent=1 // pred_fallthru
      _
    // Predicated region
    $region26: #{tpu_custom_call.1} parent=1 // pred_check
      _
    $region27: #{tpu_custom_call.1} parent=1 // pred_check_branch
      %81 = sbr.rel (0) target = $region29
    $region28: #{tpu_custom_call.1} parent=1 // pred_region
      %s83 = ssub.s32 512, 512
      %84 = vsyncadd [#allocation12], %s83
      %s85 = sshll.u32 [#allocation11], 4
      %s86 = int_to_ptr.vmem [resolvable:$true] %s85
      %91 = dma.hbm_to_vmem [thread:$0]  %s6, 512, %s86, [#allocation12], 128, 128, 8
    $region29: #{tpu_custom_call.1} parent=1 // pred_fallthru
      _
    // Predicated region
    $region30: #{tpu_custom_call.1} parent=1 // pred_check
      _
    $region31: #{tpu_custom_call.1} parent=1 // pred_check_branch
      %93 = sbr.rel (0) target = $region33
    $region32: #{tpu_custom_call.1} parent=1 // pred_region
      _
    $region33: #{tpu_custom_call.1} parent=1 // pred_fallthru
      _
    // Predicated region
    $region34: #{tpu_custom_call.1} parent=1 // pred_check
      _
    $region35: #{tpu_custom_call.1} parent=1 // pred_check_branch
      %95 = sbr.rel (0) target = $region37
    $region36: #{tpu_custom_call.1} parent=1 // pred_region
      %96 = dma.done [#allocation3], 512
    $region37: #{tpu_custom_call.1} parent=1 // pred_fallthru
      _
    // Predicated region
    $region38: #{tpu_custom_call.1} parent=1 // pred_check
      _
    $region39: #{tpu_custom_call.1} parent=1 // pred_check_branch
      %98 = sbr.rel (0) target = $region41
    $region40: #{tpu_custom_call.1} parent=1 // pred_region
      %99 = dma.done [#allocation6], 512
    $region41: #{tpu_custom_call.1} parent=1 // pred_fallthru
      _
    // Predicated region
    $region42: #{tpu_custom_call.1} parent=1 // pred_check
      _
    $region43: #{tpu_custom_call.1} parent=1 // pred_check_branch
      %101 = sbr.rel (0) target = $region45
    $region44: #{tpu_custom_call.1} parent=1 // pred_region
      %102 = dma.done [#allocation6], 512
    $region45: #{tpu_custom_call.1} parent=1 // pred_fallthru
      _
    // Predicated region
    $region46: #{tpu_custom_call.1} parent=1 // pred_check
      _
    $region47: #{tpu_custom_call.1} parent=1 // pred_check_branch
      %104 = sbr.rel (0) target = $region49
    $region48: #{tpu_custom_call.1} parent=1 // pred_region
      %105 = dma.done [#allocation9], 1024
    $region49: #{tpu_custom_call.1} parent=1 // pred_fallthru
      _
    // Predicated region
    $region50: #{tpu_custom_call.1} parent=1 // pred_check
      _
    $region51: #{tpu_custom_call.1} parent=1 // pred_check_branch
      %107 = sbr.rel (0) target = $region53
    $region52: #{tpu_custom_call.1} parent=1 // pred_region
      %108 = dma.done [#allocation9], 512
    $region53: #{tpu_custom_call.1} parent=1 // pred_fallthru
      _
    // Predicated region
    $region54: #{tpu_custom_call.1} parent=1 // pred_check
      _
    $region55: #{tpu_custom_call.1} parent=1 // pred_check_branch
      %110 = sbr.rel (0) target = $region57
    $region56: #{tpu_custom_call.1} parent=1 // pred_region
      %111 = dma.done [#allocation12], 512
    $region57: #{tpu_custom_call.1} parent=1 // pred_fallthru
      _
    %v112 = vld [vmem:[#allocation8] sm:$0xff]
    %v113 = vld [vmem:[#allocation8 + $0x8] sm:$0xff]
    %v114 = vld [vmem:[#allocation8 + $0x10] sm:$0xff]
    %v115 = vld [vmem:[#allocation8 + $0x18] sm:$0xff]
    %v116 = vld [vmem:[#allocation8 + $0x20] sm:$0xff]
    %v117 = vld [vmem:[#allocation8 + $0x28] sm:$0xff]
    %v118 = vld [vmem:[#allocation8 + $0x30] sm:$0xff]
    %v119 = vld [vmem:[#allocation8 + $0x38] sm:$0xff]
    %v120 = vld [vmem:[%s4] sm:$0x3]
    %v121 = vld [vmem:[#allocation10] sm:$0xff]
    %v122 = vld [vmem:[#allocation10 + $0x8] sm:$0xff]
    %v123 = vld [vmem:[#allocation10 + $0x10] sm:$0xff]
    %v124 = vld [vmem:[#allocation10 + $0x18] sm:$0xff]
    %v125 = vld [vmem:[#allocation11] sm:$0xff]
    %v126 = vld [vmem:[#allocation11 + $0x8] sm:$0xff]
    %v127 = vld [vmem:[#allocation11 + $0x10] sm:$0xff]
    %v128 = vld [vmem:[#allocation11 + $0x18] sm:$0xff]
    %v129 = vld [vmem:[%s7] sm:$0x3]
    %v130 = vld [vmem:[#allocation2] sm:$0xff]
    %v131 = vld [vmem:[#allocation2 + $0x8] sm:$0xff]
    %v132 = vld [vmem:[#allocation2 + $0x10] sm:$0xff]
    %v133 = vld [vmem:[#allocation2 + $0x18] sm:$0xff]
    %v134 = vld [vmem:[#allocation5] sm:$0xff]
    %v135 = vld [vmem:[#allocation5 + $0x8] sm:$0xff]
    %v136 = vld [vmem:[#allocation5 + $0x10] sm:$0xff]
    %v137 = vld [vmem:[#allocation5 + $0x18] sm:$0xff]
    %v138 = vld [vmem:[#allocation7] sm:$0xff]
    %v139 = vld [vmem:[#allocation7 + $0x8] sm:$0xff]
    %v140 = vld [vmem:[#allocation7 + $0x10] sm:$0xff]
    %v141 = vld [vmem:[#allocation7 + $0x18] sm:$0xff]
    %v143 = vlaneseq
    %v144 = vshrl.u32 %v143, 7
    %v145 = vsub.s32 0, %v144
    %v146 = vrot.slane %v120, %v145
    %v147 = vlaneseq
    %v148 = vshrl.u32 %v147, 7
    %v149 = vsub.s32 1, %v148
    %v150 = vrot.slane %v120, %v149
    %vm153 = vcmask 261120
    %v155 = vsel %vm153, %v138, 0
    %v158 = vsel %vm153, %v139, 0
    %v161 = vsel %vm153, %v140, 0
    %v164 = vsel %vm153, %v141, 0
    %166 = vmatprep.subr.mxu0 0.0
    %167 = vmatpush1.msra.mxu0 0.0
    %168 = vmatprep.subr.mxu0 0.0
    %169 = vmatpush1.msra.mxu0 0.0
    %170 = vmatprep.subr.mxu0 0.0
    %171 = vmatpush1.msra.mxu0 0.0
    %172 = vmatprep.subr.mxu0 0.0
    %173 = vmatpush1.msra.mxu0 0.0
    %174 = vmatprep.subr.mxu0 0.0
    %175 = vmatpush1.msra.mxu0 0.0
    %176 = vmatprep.subr.mxu0 0.0
    %177 = vmatpush1.msra.mxu0 0.0
    %178 = vmatprep.subr.mxu0 0.0
    %179 = vmatpush1.msra.mxu0 0.0
    %180 = vmatprep.subr.mxu0 0.0
    %181 = vmatpush1.msra.mxu0 0.0
    %182 = vmatprep.subr.mxu0 0.0
    %183 = vmatpush1.msra.mxu0 0.0
    %184 = vmatprep.subr.mxu0 0.0
    %185 = vmatpush1.msra.mxu0 0.0
    %186 = vmatprep.subr.mxu0 0.0
    %187 = vmatpush1.msra.mxu0 0.0
    %188 = vmatprep.subr.mxu0 0.0
    %189 = vmatpush1.msra.mxu0 0.0
    %190 = vmatprep.subr.mxu0 %v119
    %191 = vmatpush1.msra.mxu0 %v118
    %192 = vmatprep.subr.mxu0 %v117
    %193 = vmatpush1.msra.mxu0 %v116
    %194 = vmatprep.subr.mxu0 %v115
    %195 = vmatpush1.msra.mxu0 %v114
    %196 = vmatprep.subr.mxu0 %v113
    %197 = vmatpush1.msra.mxu0 %v112
    %198 = vmatprep.subr.mxu0 0.0
    %199 = vmatpush2.msra.mxu0 0.0
    %200 = vmatprep.subr.mxu0 0.0
    %201 = vmatpush2.msra.mxu0 0.0
    %202 = vmatprep.subr.mxu0 0.0
    %203 = vmatpush2.msra.mxu0 0.0
    %204 = vmatprep.subr.mxu0 0.0
    %205 = vmatpush2.msra.mxu0 0.0
    %206 = vmatprep.subr.mxu0 0.0
    %207 = vmatpush2.msra.mxu0 0.0
    %208 = vmatprep.subr.mxu0 0.0
    %209 = vmatpush2.msra.mxu0 0.0
    %210 = vmatprep.subr.mxu0 0.0
    %211 = vmatpush2.msra.mxu0 0.0
    %212 = vmatprep.subr.mxu0 0.0
    %213 = vmatpush2.msra.mxu0 0.0
    %214 = vmatprep.subr.mxu0 0.0
    %215 = vmatpush2.msra.mxu0 0.0
    %216 = vmatprep.subr.mxu0 0.0
    %217 = vmatpush2.msra.mxu0 0.0
    %218 = vmatprep.subr.mxu0 0.0
    %219 = vmatpush2.msra.mxu0 0.0
    %220 = vmatprep.subr.mxu0 0.0
    %221 = vmatpush2.msra.mxu0 0.0
    %222 = vmatprep.subr.mxu0 0.0
    %223 = vmatpush2.msra.mxu0 0.0
    %224 = vmatprep.subr.mxu0 0.0
    %225 = vmatpush2.msra.mxu0 0.0
    %226 = vmatprep.subr.mxu0 0.0
    %227 = vmatpush2.msra.mxu0 0.0
    %228 = vmatprep.subr.mxu0 0.0
    %229 = vmatpush2.msra.mxu0 0.0
    %230 = vmatprep.mubr.f32.mxu0 0.0
    %231 = vmatmul.mubr.f32.gmra.mxu0 %v155
    %v232 = vpop.f32.mrf.mxu0
    %v233 = vadd.f32 %v146, %v232
    %v234 = vpop.f32.mrf.mxu0
    %v235 = vadd.f32 %v150, %v234
    %236 = vmatprep.mubr.f32.mxu0 0.0
    %237 = vmatmul.mubr.f32.gmra.mxu0 %v158
    %v238 = vpop.f32.mrf.mxu0
    %v239 = vadd.f32 %v146, %v238
    %v240 = vpop.f32.mrf.mxu0
    %v241 = vadd.f32 %v150, %v240
    %242 = vmatprep.mubr.f32.mxu0 0.0
    %243 = vmatmul.mubr.f32.gmra.mxu0 %v161
    %v244 = vpop.f32.mrf.mxu0
    %v245 = vadd.f32 %v146, %v244
    %v246 = vpop.f32.mrf.mxu0
    %v247 = vadd.f32 %v150, %v246
    %248 = vmatprep.mubr.f32.mxu0 0.0
    %249 = vmatmul.mubr.f32.gmra.mxu0 %v164
    %v250 = vpop.f32.mrf.mxu0
    %v251 = vadd.f32 %v146, %v250
    %v252 = vpop.f32.mrf.mxu0
    %v253 = vadd.f32 %v150, %v252
    %254 = vdwg.mxu0
    %vm255 = vcmask 64512
    %v257 = vsel %vm255, %v130, 0
    %259 = vmatprep.subr.mxu0 0.0
    %260 = vmatpush1.msra.mxu0 0.0
    %261 = vmatprep.subr.mxu0 0.0
    %262 = vmatpush1.msra.mxu0 0.0
    %263 = vmatprep.subr.mxu0 0.0
    %264 = vmatpush1.msra.mxu0 0.0
    %265 = vmatprep.subr.mxu0 0.0
    %266 = vmatpush1.msra.mxu0 0.0
    %267 = vmatprep.subr.mxu0 0.0
    %268 = vmatpush1.msra.mxu0 0.0
    %269 = vmatprep.subr.mxu0 0.0
    %270 = vmatpush1.msra.mxu0 0.0
    %271 = vmatprep.subr.mxu0 0.0
    %272 = vmatpush1.msra.mxu0 0.0
    %273 = vmatprep.subr.mxu0 0.0
    %274 = vmatpush1.msra.mxu0 0.0
    %275 = vmatprep.subr.mxu0 0.0
    %276 = vmatpush1.msra.mxu0 0.0
    %277 = vmatprep.subr.mxu0 0.0
    %278 = vmatpush1.msra.mxu0 0.0
    %279 = vmatprep.subr.mxu0 0.0
    %280 = vmatpush1.msra.mxu0 0.0
    %281 = vmatprep.subr.mxu0 0.0
    %282 = vmatpush1.msra.mxu0 0.0
    %283 = vmatprep.subr.mxu0 0.0
    %284 = vmatpush1.msra.mxu0 0.0
    %285 = vmatprep.subr.mxu0 0.0
    %286 = vmatpush1.msra.mxu0 0.0
    %287 = vmatprep.subr.mxu0 0.0
    %288 = vmatpush1.msra.mxu0 0.0
    %289 = vmatprep.subr.mxu0 0.0
    %290 = vmatpush1.msra.mxu0 %v233
    %291 = vmatprep.subr.mxu0 0.0
    %292 = vmatpush2.msra.mxu0 0.0
    %293 = vmatprep.subr.mxu0 0.0
    %294 = vmatpush2.msra.mxu0 0.0
    %295 = vmatprep.subr.mxu0 0.0
    %296 = vmatpush2.msra.mxu0 0.0
    %297 = vmatprep.subr.mxu0 0.0
    %298 = vmatpush2.msra.mxu0 0.0
    %299 = vmatprep.subr.mxu0 0.0
    %300 = vmatpush2.msra.mxu0 0.0
    %301 = vmatprep.subr.mxu0 0.0
    %302 = vmatpush2.msra.mxu0 0.0
    %303 = vmatprep.subr.mxu0 0.0
    %304 = vmatpush2.msra.mxu0 0.0
    %305 = vmatprep.subr.mxu0 0.0
    %306 = vmatpush2.msra.mxu0 0.0
    %307 = vmatprep.subr.mxu0 0.0
    %308 = vmatpush2.msra.mxu0 0.0
    %309 = vmatprep.subr.mxu0 0.0
    %310 = vmatpush2.msra.mxu0 0.0
    %311 = vmatprep.subr.mxu0 0.0
    %312 = vmatpush2.msra.mxu0 0.0
    %313 = vmatprep.subr.mxu0 0.0
    %314 = vmatpush2.msra.mxu0 0.0
    %315 = vmatprep.subr.mxu0 0.0
    %316 = vmatpush2.msra.mxu0 0.0
    %317 = vmatprep.subr.mxu0 0.0
    %318 = vmatpush2.msra.mxu0 0.0
    %319 = vmatprep.subr.mxu0 0.0
    %320 = vmatpush2.msra.mxu0 0.0
    %321 = vmatprep.subr.mxu0 0.0
    %322 = vmatpush2.msra.mxu0 0.0
    %323 = vmatprep.mubr.f32.mxu0 0.0
    %324 = vmatmul.mubr.f32.gmra.mxu0 %v257
    %v325 = vpop.f32.mrf.mxu0
    %v326 = vadd.f32 0.0, %v325
    %v327 = vpop.f32.mrf.mxu0
    %328 = vdwg.mxu0
    %v330 = vsel %vm255, %v131, 0
    %332 = vmatprep.subr.mxu0 0.0
    %333 = vmatpush1.msra.mxu0 0.0
    %334 = vmatprep.subr.mxu0 0.0
    %335 = vmatpush1.msra.mxu0 0.0
    %336 = vmatprep.subr.mxu0 0.0
    %337 = vmatpush1.msra.mxu0 0.0
    %338 = vmatprep.subr.mxu0 0.0
    %339 = vmatpush1.msra.mxu0 0.0
    %340 = vmatprep.subr.mxu0 0.0
    %341 = vmatpush1.msra.mxu0 0.0
    %342 = vmatprep.subr.mxu0 0.0
    %343 = vmatpush1.msra.mxu0 0.0
    %344 = vmatprep.subr.mxu0 0.0
    %345 = vmatpush1.msra.mxu0 0.0
    %346 = vmatprep.subr.mxu0 0.0
    %347 = vmatpush1.msra.mxu0 0.0
    %348 = vmatprep.subr.mxu0 0.0
    %349 = vmatpush1.msra.mxu0 0.0
    %350 = vmatprep.subr.mxu0 0.0
    %351 = vmatpush1.msra.mxu0 0.0
    %352 = vmatprep.subr.mxu0 0.0
    %353 = vmatpush1.msra.mxu0 0.0
    %354 = vmatprep.subr.mxu0 0.0
    %355 = vmatpush1.msra.mxu0 0.0
    %356 = vmatprep.subr.mxu0 0.0
    %357 = vmatpush1.msra.mxu0 0.0
    %358 = vmatprep.subr.mxu0 0.0
    %359 = vmatpush1.msra.mxu0 0.0
    %360 = vmatprep.subr.mxu0 0.0
    %361 = vmatpush1.msra.mxu0 0.0
    %362 = vmatprep.subr.mxu0 0.0
    %363 = vmatpush1.msra.mxu0 %v239
    %364 = vmatprep.subr.mxu0 0.0
    %365 = vmatpush2.msra.mxu0 0.0
    %366 = vmatprep.subr.mxu0 0.0
    %367 = vmatpush2.msra.mxu0 0.0
    %368 = vmatprep.subr.mxu0 0.0
    %369 = vmatpush2.msra.mxu0 0.0
    %370 = vmatprep.subr.mxu0 0.0
    %371 = vmatpush2.msra.mxu0 0.0
    %372 = vmatprep.subr.mxu0 0.0
    %373 = vmatpush2.msra.mxu0 0.0
    %374 = vmatprep.subr.mxu0 0.0
    %375 = vmatpush2.msra.mxu0 0.0
    %376 = vmatprep.subr.mxu0 0.0
    %377 = vmatpush2.msra.mxu0 0.0
    %378 = vmatprep.subr.mxu0 0.0
    %379 = vmatpush2.msra.mxu0 0.0
    %380 = vmatprep.subr.mxu0 0.0
    %381 = vmatpush2.msra.mxu0 0.0
    %382 = vmatprep.subr.mxu0 0.0
    %383 = vmatpush2.msra.mxu0 0.0
    %384 = vmatprep.subr.mxu0 0.0
    %385 = vmatpush2.msra.mxu0 0.0
    %386 = vmatprep.subr.mxu0 0.0
    %387 = vmatpush2.msra.mxu0 0.0
    %388 = vmatprep.subr.mxu0 0.0
    %389 = vmatpush2.msra.mxu0 0.0
    %390 = vmatprep.subr.mxu0 0.0
    %391 = vmatpush2.msra.mxu0 0.0
    %392 = vmatprep.subr.mxu0 0.0
    %393 = vmatpush2.msra.mxu0 0.0
    %394 = vmatprep.subr.mxu0 0.0
    %395 = vmatpush2.msra.mxu0 0.0
    %396 = vmatprep.mubr.f32.mxu0 0.0
    %397 = vmatmul.mubr.f32.gmra.mxu0 %v330
    %v398 = vpop.f32.mrf.mxu0
    %v399 = vadd.f32 0.0, %v398
    %v400 = vpop.f32.mrf.mxu0
    %401 = vdwg.mxu0
    %v403 = vsel %vm255, %v132, 0
    %405 = vmatprep.subr.mxu0 0.0
    %406 = vmatpush1.msra.mxu0 0.0
    %407 = vmatprep.subr.mxu0 0.0
    %408 = vmatpush1.msra.mxu0 0.0
    %409 = vmatprep.subr.mxu0 0.0
    %410 = vmatpush1.msra.mxu0 0.0
    %411 = vmatprep.subr.mxu0 0.0
    %412 = vmatpush1.msra.mxu0 0.0
    %413 = vmatprep.subr.mxu0 0.0
    %414 = vmatpush1.msra.mxu0 0.0
    %415 = vmatprep.subr.mxu0 0.0
    %416 = vmatpush1.msra.mxu0 0.0
    %417 = vmatprep.subr.mxu0 0.0
    %418 = vmatpush1.msra.mxu0 0.0
    %419 = vmatprep.subr.mxu0 0.0
    %420 = vmatpush1.msra.mxu0 0.0
    %421 = vmatprep.subr.mxu0 0.0
    %422 = vmatpush1.msra.mxu0 0.0
    %423 = vmatprep.subr.mxu0 0.0
    %424 = vmatpush1.msra.mxu0 0.0
    %425 = vmatprep.subr.mxu0 0.0
    %426 = vmatpush1.msra.mxu0 0.0
    %427 = vmatprep.subr.mxu0 0.0
    %428 = vmatpush1.msra.mxu0 0.0
    %429 = vmatprep.subr.mxu0 0.0
    %430 = vmatpush1.msra.mxu0 0.0
    %431 = vmatprep.subr.mxu0 0.0
    %432 = vmatpush1.msra.mxu0 0.0
    %433 = vmatprep.subr.mxu0 0.0
    %434 = vmatpush1.msra.mxu0 0.0
    %435 = vmatprep.subr.mxu0 0.0
    %436 = vmatpush1.msra.mxu0 %v245
    %437 = vmatprep.subr.mxu0 0.0
    %438 = vmatpush2.msra.mxu0 0.0
    %439 = vmatprep.subr.mxu0 0.0
    %440 = vmatpush2.msra.mxu0 0.0
    %441 = vmatprep.subr.mxu0 0.0
    %442 = vmatpush2.msra.mxu0 0.0
    %443 = vmatprep.subr.mxu0 0.0
    %444 = vmatpush2.msra.mxu0 0.0
    %445 = vmatprep.subr.mxu0 0.0
    %446 = vmatpush2.msra.mxu0 0.0
    %447 = vmatprep.subr.mxu0 0.0
    %448 = vmatpush2.msra.mxu0 0.0
    %449 = vmatprep.subr.mxu0 0.0
    %450 = vmatpush2.msra.mxu0 0.0
    %451 = vmatprep.subr.mxu0 0.0
    %452 = vmatpush2.msra.mxu0 0.0
    %453 = vmatprep.subr.mxu0 0.0
    %454 = vmatpush2.msra.mxu0 0.0
    %455 = vmatprep.subr.mxu0 0.0
    %456 = vmatpush2.msra.mxu0 0.0
    %457 = vmatprep.subr.mxu0 0.0
    %458 = vmatpush2.msra.mxu0 0.0
    %459 = vmatprep.subr.mxu0 0.0
    %460 = vmatpush2.msra.mxu0 0.0
    %461 = vmatprep.subr.mxu0 0.0
    %462 = vmatpush2.msra.mxu0 0.0
    %463 = vmatprep.subr.mxu0 0.0
    %464 = vmatpush2.msra.mxu0 0.0
    %465 = vmatprep.subr.mxu0 0.0
    %466 = vmatpush2.msra.mxu0 0.0
    %467 = vmatprep.subr.mxu0 0.0
    %468 = vmatpush2.msra.mxu0 0.0
    %469 = vmatprep.mubr.f32.mxu0 0.0
    %470 = vmatmul.mubr.f32.gmra.mxu0 %v403
    %v471 = vpop.f32.mrf.mxu0
    %v472 = vadd.f32 0.0, %v471
    %v473 = vpop.f32.mrf.mxu0
    %474 = vdwg.mxu0
    %v476 = vsel %vm255, %v133, 0
    %478 = vmatprep.subr.mxu0 0.0
    %479 = vmatpush1.msra.mxu0 0.0
    %480 = vmatprep.subr.mxu0 0.0
    %481 = vmatpush1.msra.mxu0 0.0
    %482 = vmatprep.subr.mxu0 0.0
    %483 = vmatpush1.msra.mxu0 0.0
    %484 = vmatprep.subr.mxu0 0.0
    %485 = vmatpush1.msra.mxu0 0.0
    %486 = vmatprep.subr.mxu0 0.0
    %487 = vmatpush1.msra.mxu0 0.0
    %488 = vmatprep.subr.mxu0 0.0
    %489 = vmatpush1.msra.mxu0 0.0
    %490 = vmatprep.subr.mxu0 0.0
    %491 = vmatpush1.msra.mxu0 0.0
    %492 = vmatprep.subr.mxu0 0.0
    %493 = vmatpush1.msra.mxu0 0.0
    %494 = vmatprep.subr.mxu0 0.0
    %495 = vmatpush1.msra.mxu0 0.0
    %496 = vmatprep.subr.mxu0 0.0
    %497 = vmatpush1.msra.mxu0 0.0
    %498 = vmatprep.subr.mxu0 0.0
    %499 = vmatpush1.msra.mxu0 0.0
    %500 = vmatprep.subr.mxu0 0.0
    %501 = vmatpush1.msra.mxu0 0.0
    %502 = vmatprep.subr.mxu0 0.0
    %503 = vmatpush1.msra.mxu0 0.0
    %504 = vmatprep.subr.mxu0 0.0
    %505 = vmatpush1.msra.mxu0 0.0
    %506 = vmatprep.subr.mxu0 0.0
    %507 = vmatpush1.msra.mxu0 0.0
    %508 = vmatprep.subr.mxu0 0.0
    %509 = vmatpush1.msra.mxu0 %v251
    %510 = vmatprep.subr.mxu0 0.0
    %511 = vmatpush2.msra.mxu0 0.0
    %512 = vmatprep.subr.mxu0 0.0
    %513 = vmatpush2.msra.mxu0 0.0
    %514 = vmatprep.subr.mxu0 0.0
    %515 = vmatpush2.msra.mxu0 0.0
    %516 = vmatprep.subr.mxu0 0.0
    %517 = vmatpush2.msra.mxu0 0.0
    %518 = vmatprep.subr.mxu0 0.0
    %519 = vmatpush2.msra.mxu0 0.0
    %520 = vmatprep.subr.mxu0 0.0
    %521 = vmatpush2.msra.mxu0 0.0
    %522 = vmatprep.subr.mxu0 0.0
    %523 = vmatpush2.msra.mxu0 0.0
    %524 = vmatprep.subr.mxu0 0.0
    %525 = vmatpush2.msra.mxu0 0.0
    %526 = vmatprep.subr.mxu0 0.0
    %527 = vmatpush2.msra.mxu0 0.0
    %528 = vmatprep.subr.mxu0 0.0
    %529 = vmatpush2.msra.mxu0 0.0
    %530 = vmatprep.subr.mxu0 0.0
    %531 = vmatpush2.msra.mxu0 0.0
    %532 = vmatprep.subr.mxu0 0.0
    %533 = vmatpush2.msra.mxu0 0.0
    %534 = vmatprep.subr.mxu0 0.0
    %535 = vmatpush2.msra.mxu0 0.0
    %536 = vmatprep.subr.mxu0 0.0
    %537 = vmatpush2.msra.mxu0 0.0
    %538 = vmatprep.subr.mxu0 0.0
    %539 = vmatpush2.msra.mxu0 0.0
    %540 = vmatprep.subr.mxu0 0.0
    %541 = vmatpush2.msra.mxu0 0.0
    %542 = vmatprep.mubr.f32.mxu0 0.0
    %543 = vmatmul.mubr.f32.gmra.mxu0 %v476
    %v544 = vpop.f32.mrf.mxu0
    %v545 = vadd.f32 0.0, %v544
    %v546 = vpop.f32.mrf.mxu0
    %547 = vdwg.mxu0
    %v549 = vlaneseq
    %v550 = vshrl.u32 %v549, 7
    %v551 = vsub.s32 0, %v550
    %v552 = vrot.slane %v129, %v551
    %v554 = vadd.f32 %v326, %v552
    %v555 = vadd.f32 %v399, %v552
    %v556 = vadd.f32 %v472, %v552
    %v557 = vadd.f32 %v545, %v552
    %559 = vrot.lane.b32.xlu0 %v233, 96
    %v560 = vpop.permute.xlu0 %559
    %v563 = vsel %vm255, %v134, 0
    %565 = vmatprep.subr.mxu0 0.0
    %566 = vmatpush1.msra.mxu0 0.0
    %567 = vmatprep.subr.mxu0 0.0
    %568 = vmatpush1.msra.mxu0 0.0
    %569 = vmatprep.subr.mxu0 0.0
    %570 = vmatpush1.msra.mxu0 0.0
    %571 = vmatprep.subr.mxu0 0.0
    %572 = vmatpush1.msra.mxu0 0.0
    %573 = vmatprep.subr.mxu0 0.0
    %574 = vmatpush1.msra.mxu0 0.0
    %575 = vmatprep.subr.mxu0 0.0
    %576 = vmatpush1.msra.mxu0 0.0
    %577 = vmatprep.subr.mxu0 0.0
    %578 = vmatpush1.msra.mxu0 0.0
    %579 = vmatprep.subr.mxu0 0.0
    %580 = vmatpush1.msra.mxu0 0.0
    %581 = vmatprep.subr.mxu0 0.0
    %582 = vmatpush1.msra.mxu0 0.0
    %583 = vmatprep.subr.mxu0 0.0
    %584 = vmatpush1.msra.mxu0 0.0
    %585 = vmatprep.subr.mxu0 0.0
    %586 = vmatpush1.msra.mxu0 0.0
    %587 = vmatprep.subr.mxu0 0.0
    %588 = vmatpush1.msra.mxu0 0.0
    %589 = vmatprep.subr.mxu0 0.0
    %590 = vmatpush1.msra.mxu0 0.0
    %591 = vmatprep.subr.mxu0 0.0
    %592 = vmatpush1.msra.mxu0 0.0
    %593 = vmatprep.subr.mxu0 0.0
    %594 = vmatpush1.msra.mxu0 0.0
    %595 = vmatprep.subr.mxu0 0.0
    %596 = vmatpush1.msra.mxu0 %v560
    %597 = vmatprep.subr.mxu0 0.0
    %598 = vmatpush2.msra.mxu0 0.0
    %599 = vmatprep.subr.mxu0 0.0
    %600 = vmatpush2.msra.mxu0 0.0
    %601 = vmatprep.subr.mxu0 0.0
    %602 = vmatpush2.msra.mxu0 0.0
    %603 = vmatprep.subr.mxu0 0.0
    %604 = vmatpush2.msra.mxu0 0.0
    %605 = vmatprep.subr.mxu0 0.0
    %606 = vmatpush2.msra.mxu0 0.0
    %607 = vmatprep.subr.mxu0 0.0
    %608 = vmatpush2.msra.mxu0 0.0
    %609 = vmatprep.subr.mxu0 0.0
    %610 = vmatpush2.msra.mxu0 0.0
    %611 = vmatprep.subr.mxu0 0.0
    %612 = vmatpush2.msra.mxu0 0.0
    %613 = vmatprep.subr.mxu0 0.0
    %614 = vmatpush2.msra.mxu0 0.0
    %615 = vmatprep.subr.mxu0 0.0
    %616 = vmatpush2.msra.mxu0 0.0
    %617 = vmatprep.subr.mxu0 0.0
    %618 = vmatpush2.msra.mxu0 0.0
    %619 = vmatprep.subr.mxu0 0.0
    %620 = vmatpush2.msra.mxu0 0.0
    %621 = vmatprep.subr.mxu0 0.0
    %622 = vmatpush2.msra.mxu0 0.0
    %623 = vmatprep.subr.mxu0 0.0
    %624 = vmatpush2.msra.mxu0 0.0
    %625 = vmatprep.subr.mxu0 0.0
    %626 = vmatpush2.msra.mxu0 0.0
    %627 = vmatprep.subr.mxu0 0.0
    %628 = vmatpush2.msra.mxu0 0.0
    %629 = vmatprep.mubr.f32.mxu0 0.0
    %630 = vmatmul.mubr.f32.gmra.mxu0 %v563
    %v631 = vpop.f32.mrf.mxu0
    %v632 = vadd.f32 0.0, %v631
    %v633 = vpop.f32.mrf.mxu0
    %634 = vdwg.mxu0
    %636 = vrot.lane.b32.xlu0 %v239, 96
    %v637 = vpop.permute.xlu0 %636
    %v640 = vsel %vm255, %v135, 0
    %642 = vmatprep.subr.mxu0 0.0
    %643 = vmatpush1.msra.mxu0 0.0
    %644 = vmatprep.subr.mxu0 0.0
    %645 = vmatpush1.msra.mxu0 0.0
    %646 = vmatprep.subr.mxu0 0.0
    %647 = vmatpush1.msra.mxu0 0.0
    %648 = vmatprep.subr.mxu0 0.0
    %649 = vmatpush1.msra.mxu0 0.0
    %650 = vmatprep.subr.mxu0 0.0
    %651 = vmatpush1.msra.mxu0 0.0
    %652 = vmatprep.subr.mxu0 0.0
    %653 = vmatpush1.msra.mxu0 0.0
    %654 = vmatprep.subr.mxu0 0.0
    %655 = vmatpush1.msra.mxu0 0.0
    %656 = vmatprep.subr.mxu0 0.0
    %657 = vmatpush1.msra.mxu0 0.0
    %658 = vmatprep.subr.mxu0 0.0
    %659 = vmatpush1.msra.mxu0 0.0
    %660 = vmatprep.subr.mxu0 0.0
    %661 = vmatpush1.msra.mxu0 0.0
    %662 = vmatprep.subr.mxu0 0.0
    %663 = vmatpush1.msra.mxu0 0.0
    %664 = vmatprep.subr.mxu0 0.0
    %665 = vmatpush1.msra.mxu0 0.0
    %666 = vmatprep.subr.mxu0 0.0
    %667 = vmatpush1.msra.mxu0 0.0
    %668 = vmatprep.subr.mxu0 0.0
    %669 = vmatpush1.msra.mxu0 0.0
    %670 = vmatprep.subr.mxu0 0.0
    %671 = vmatpush1.msra.mxu0 0.0
    %672 = vmatprep.subr.mxu0 0.0
    %673 = vmatpush1.msra.mxu0 %v637
    %674 = vmatprep.subr.mxu0 0.0
    %675 = vmatpush2.msra.mxu0 0.0
    %676 = vmatprep.subr.mxu0 0.0
    %677 = vmatpush2.msra.mxu0 0.0
    %678 = vmatprep.subr.mxu0 0.0
    %679 = vmatpush2.msra.mxu0 0.0
    %680 = vmatprep.subr.mxu0 0.0
    %681 = vmatpush2.msra.mxu0 0.0
    %682 = vmatprep.subr.mxu0 0.0
    %683 = vmatpush2.msra.mxu0 0.0
    %684 = vmatprep.subr.mxu0 0.0
    %685 = vmatpush2.msra.mxu0 0.0
    %686 = vmatprep.subr.mxu0 0.0
    %687 = vmatpush2.msra.mxu0 0.0
    %688 = vmatprep.subr.mxu0 0.0
    %689 = vmatpush2.msra.mxu0 0.0
    %690 = vmatprep.subr.mxu0 0.0
    %691 = vmatpush2.msra.mxu0 0.0
    %692 = vmatprep.subr.mxu0 0.0
    %693 = vmatpush2.msra.mxu0 0.0
    %694 = vmatprep.subr.mxu0 0.0
    %695 = vmatpush2.msra.mxu0 0.0
    %696 = vmatprep.subr.mxu0 0.0
    %697 = vmatpush2.msra.mxu0 0.0
    %698 = vmatprep.subr.mxu0 0.0
    %699 = vmatpush2.msra.mxu0 0.0
    %700 = vmatprep.subr.mxu0 0.0
    %701 = vmatpush2.msra.mxu0 0.0
    %702 = vmatprep.subr.mxu0 0.0
    %703 = vmatpush2.msra.mxu0 0.0
    %704 = vmatprep.subr.mxu0 0.0
    %705 = vmatpush2.msra.mxu0 0.0
    %706 = vmatprep.mubr.f32.mxu0 0.0
    %707 = vmatmul.mubr.f32.gmra.mxu0 %v640
    %v708 = vpop.f32.mrf.mxu0
    %v709 = vadd.f32 0.0, %v708
    %v710 = vpop.f32.mrf.mxu0
    %711 = vdwg.mxu0
    %713 = vrot.lane.b32.xlu0 %v245, 96
    %v714 = vpop.permute.xlu0 %713
    %v717 = vsel %vm255, %v136, 0
    %719 = vmatprep.subr.mxu0 0.0
    %720 = vmatpush1.msra.mxu0 0.0
    %721 = vmatprep.subr.mxu0 0.0
    %722 = vmatpush1.msra.mxu0 0.0
    %723 = vmatprep.subr.mxu0 0.0
    %724 = vmatpush1.msra.mxu0 0.0
    %725 = vmatprep.subr.mxu0 0.0
    %726 = vmatpush1.msra.mxu0 0.0
    %727 = vmatprep.subr.mxu0 0.0
    %728 = vmatpush1.msra.mxu0 0.0
    %729 = vmatprep.subr.mxu0 0.0
    %730 = vmatpush1.msra.mxu0 0.0
    %731 = vmatprep.subr.mxu0 0.0
    %732 = vmatpush1.msra.mxu0 0.0
    %733 = vmatprep.subr.mxu0 0.0
    %734 = vmatpush1.msra.mxu0 0.0
    %735 = vmatprep.subr.mxu0 0.0
    %736 = vmatpush1.msra.mxu0 0.0
    %737 = vmatprep.subr.mxu0 0.0
    %738 = vmatpush1.msra.mxu0 0.0
    %739 = vmatprep.subr.mxu0 0.0
    %740 = vmatpush1.msra.mxu0 0.0
    %741 = vmatprep.subr.mxu0 0.0
    %742 = vmatpush1.msra.mxu0 0.0
    %743 = vmatprep.subr.mxu0 0.0
    %744 = vmatpush1.msra.mxu0 0.0
    %745 = vmatprep.subr.mxu0 0.0
    %746 = vmatpush1.msra.mxu0 0.0
    %747 = vmatprep.subr.mxu0 0.0
    %748 = vmatpush1.msra.mxu0 0.0
    %749 = vmatprep.subr.mxu0 0.0
    %750 = vmatpush1.msra.mxu0 %v714
    %751 = vmatprep.subr.mxu0 0.0
    %752 = vmatpush2.msra.mxu0 0.0
    %753 = vmatprep.subr.mxu0 0.0
    %754 = vmatpush2.msra.mxu0 0.0
    %755 = vmatprep.subr.mxu0 0.0
    %756 = vmatpush2.msra.mxu0 0.0
    %757 = vmatprep.subr.mxu0 0.0
    %758 = vmatpush2.msra.mxu0 0.0
    %759 = vmatprep.subr.mxu0 0.0
    %760 = vmatpush2.msra.mxu0 0.0
    %761 = vmatprep.subr.mxu0 0.0
    %762 = vmatpush2.msra.mxu0 0.0
    %763 = vmatprep.subr.mxu0 0.0
    %764 = vmatpush2.msra.mxu0 0.0
    %765 = vmatprep.subr.mxu0 0.0
    %766 = vmatpush2.msra.mxu0 0.0
    %767 = vmatprep.subr.mxu0 0.0
    %768 = vmatpush2.msra.mxu0 0.0
    %769 = vmatprep.subr.mxu0 0.0
    %770 = vmatpush2.msra.mxu0 0.0
    %771 = vmatprep.subr.mxu0 0.0
    %772 = vmatpush2.msra.mxu0 0.0
    %773 = vmatprep.subr.mxu0 0.0
    %774 = vmatpush2.msra.mxu0 0.0
    %775 = vmatprep.subr.mxu0 0.0
    %776 = vmatpush2.msra.mxu0 0.0
    %777 = vmatprep.subr.mxu0 0.0
    %778 = vmatpush2.msra.mxu0 0.0
    %779 = vmatprep.subr.mxu0 0.0
    %780 = vmatpush2.msra.mxu0 0.0
    %781 = vmatprep.subr.mxu0 0.0
    %782 = vmatpush2.msra.mxu0 0.0
    %783 = vmatprep.mubr.f32.mxu0 0.0
    %784 = vmatmul.mubr.f32.gmra.mxu0 %v717
    %v785 = vpop.f32.mrf.mxu0
    %v786 = vadd.f32 0.0, %v785
    %v787 = vpop.f32.mrf.mxu0
    %788 = vdwg.mxu0
    %790 = vrot.lane.b32.xlu0 %v251, 96
    %v791 = vpop.permute.xlu0 %790
    %v794 = vsel %vm255, %v137, 0
    %796 = vmatprep.subr.mxu0 0.0
    %797 = vmatpush1.msra.mxu0 0.0
    %798 = vmatprep.subr.mxu0 0.0
    %799 = vmatpush1.msra.mxu0 0.0
    %800 = vmatprep.subr.mxu0 0.0
    %801 = vmatpush1.msra.mxu0 0.0
    %802 = vmatprep.subr.mxu0 0.0
    %803 = vmatpush1.msra.mxu0 0.0
    %804 = vmatprep.subr.mxu0 0.0
    %805 = vmatpush1.msra.mxu0 0.0
    %806 = vmatprep.subr.mxu0 0.0
    %807 = vmatpush1.msra.mxu0 0.0
    %808 = vmatprep.subr.mxu0 0.0
    %809 = vmatpush1.msra.mxu0 0.0
    %810 = vmatprep.subr.mxu0 0.0
    %811 = vmatpush1.msra.mxu0 0.0
    %812 = vmatprep.subr.mxu0 0.0
    %813 = vmatpush1.msra.mxu0 0.0
    %814 = vmatprep.subr.mxu0 0.0
    %815 = vmatpush1.msra.mxu0 0.0
    %816 = vmatprep.subr.mxu0 0.0
    %817 = vmatpush1.msra.mxu0 0.0
    %818 = vmatprep.subr.mxu0 0.0
    %819 = vmatpush1.msra.mxu0 0.0
    %820 = vmatprep.subr.mxu0 0.0
    %821 = vmatpush1.msra.mxu0 0.0
    %822 = vmatprep.subr.mxu0 0.0
    %823 = vmatpush1.msra.mxu0 0.0
    %824 = vmatprep.subr.mxu0 0.0
    %825 = vmatpush1.msra.mxu0 0.0
    %826 = vmatprep.subr.mxu0 0.0
    %827 = vmatpush1.msra.mxu0 %v791
    %828 = vmatprep.subr.mxu0 0.0
    %829 = vmatpush2.msra.mxu0 0.0
    %830 = vmatprep.subr.mxu0 0.0
    %831 = vmatpush2.msra.mxu0 0.0
    %832 = vmatprep.subr.mxu0 0.0
    %833 = vmatpush2.msra.mxu0 0.0
    %834 = vmatprep.subr.mxu0 0.0
    %835 = vmatpush2.msra.mxu0 0.0
    %836 = vmatprep.subr.mxu0 0.0
    %837 = vmatpush2.msra.mxu0 0.0
    %838 = vmatprep.subr.mxu0 0.0
    %839 = vmatpush2.msra.mxu0 0.0
    %840 = vmatprep.subr.mxu0 0.0
    %841 = vmatpush2.msra.mxu0 0.0
    %842 = vmatprep.subr.mxu0 0.0
    %843 = vmatpush2.msra.mxu0 0.0
    %844 = vmatprep.subr.mxu0 0.0
    %845 = vmatpush2.msra.mxu0 0.0
    %846 = vmatprep.subr.mxu0 0.0
    %847 = vmatpush2.msra.mxu0 0.0
    %848 = vmatprep.subr.mxu0 0.0
    %849 = vmatpush2.msra.mxu0 0.0
    %850 = vmatprep.subr.mxu0 0.0
    %851 = vmatpush2.msra.mxu0 0.0
    %852 = vmatprep.subr.mxu0 0.0
    %853 = vmatpush2.msra.mxu0 0.0
    %854 = vmatprep.subr.mxu0 0.0
    %855 = vmatpush2.msra.mxu0 0.0
    %856 = vmatprep.subr.mxu0 0.0
    %857 = vmatpush2.msra.mxu0 0.0
    %858 = vmatprep.subr.mxu0 0.0
    %859 = vmatpush2.msra.mxu0 0.0
    %860 = vmatprep.mubr.f32.mxu0 0.0
    %861 = vmatmul.mubr.f32.gmra.mxu0 %v794
    %v862 = vpop.f32.mrf.mxu0
    %v863 = vadd.f32 0.0, %v862
    %v864 = vpop.f32.mrf.mxu0
    %865 = vdwg.mxu0
    %866 = vrot.lane.b32.xlu0 %v552, 96
    %v867 = vpop.permute.xlu0 %866
    %v869 = vadd.f32 %v632, %v867
    %v870 = vadd.f32 %v709, %v867
    %v871 = vadd.f32 %v786, %v867
    %v872 = vadd.f32 %v863, %v867
    %v874 = vsel %vm153, %v869, 0
    %v877 = vsel %vm153, %v870, 0
    %v880 = vsel %vm153, %v871, 0
    %v883 = vsel %vm153, %v872, 0
    %885 = vmatprep.subr.mxu0 0.0
    %886 = vmatpush1.msra.mxu0 0.0
    %887 = vmatprep.subr.mxu0 0.0
    %888 = vmatpush1.msra.mxu0 0.0
    %889 = vmatprep.subr.mxu0 0.0
    %890 = vmatpush1.msra.mxu0 0.0
    %891 = vmatprep.subr.mxu0 0.0
    %892 = vmatpush1.msra.mxu0 0.0
    %893 = vmatprep.subr.mxu0 0.0
    %894 = vmatpush1.msra.mxu0 0.0
    %895 = vmatprep.subr.mxu0 0.0
    %896 = vmatpush1.msra.mxu0 0.0
    %897 = vmatprep.subr.mxu0 0.0
    %898 = vmatpush1.msra.mxu0 0.0
    %899 = vmatprep.subr.mxu0 0.0
    %900 = vmatpush1.msra.mxu0 0.0
    %901 = vmatprep.subr.mxu0 0.0
    %902 = vmatpush1.msra.mxu0 0.0
    %903 = vmatprep.subr.mxu0 0.0
    %904 = vmatpush1.msra.mxu0 0.0
    %905 = vmatprep.subr.mxu0 0.0
    %906 = vmatpush1.msra.mxu0 0.0
    %907 = vmatprep.subr.mxu0 0.0
    %908 = vmatpush1.msra.mxu0 0.0
    %909 = vmatprep.subr.mxu0 0.0
    %910 = vmatpush1.msra.mxu0 %v128
    %911 = vmatprep.subr.mxu0 0.0
    %912 = vmatpush1.msra.mxu0 %v127
    %913 = vmatprep.subr.mxu0 0.0
    %914 = vmatpush1.msra.mxu0 %v126
    %915 = vmatprep.subr.mxu0 0.0
    %916 = vmatpush1.msra.mxu0 %v125
    %917 = vmatprep.subr.mxu0 0.0
    %918 = vmatpush2.msra.mxu0 0.0
    %919 = vmatprep.subr.mxu0 0.0
    %920 = vmatpush2.msra.mxu0 0.0
    %921 = vmatprep.subr.mxu0 0.0
    %922 = vmatpush2.msra.mxu0 0.0
    %923 = vmatprep.subr.mxu0 0.0
    %924 = vmatpush2.msra.mxu0 0.0
    %925 = vmatprep.subr.mxu0 0.0
    %926 = vmatpush2.msra.mxu0 0.0
    %927 = vmatprep.subr.mxu0 0.0
    %928 = vmatpush2.msra.mxu0 0.0
    %929 = vmatprep.subr.mxu0 0.0
    %930 = vmatpush2.msra.mxu0 0.0
    %931 = vmatprep.subr.mxu0 0.0
    %932 = vmatpush2.msra.mxu0 0.0
    %933 = vmatprep.subr.mxu0 0.0
    %934 = vmatpush2.msra.mxu0 0.0
    %935 = vmatprep.subr.mxu0 0.0
    %936 = vmatpush2.msra.mxu0 0.0
    %937 = vmatprep.subr.mxu0 0.0
    %938 = vmatpush2.msra.mxu0 0.0
    %939 = vmatprep.subr.mxu0 0.0
    %940 = vmatpush2.msra.mxu0 0.0
    %941 = vmatprep.subr.mxu0 0.0
    %942 = vmatpush2.msra.mxu0 0.0
    %943 = vmatprep.subr.mxu0 0.0
    %944 = vmatpush2.msra.mxu0 0.0
    %945 = vmatprep.subr.mxu0 0.0
    %946 = vmatpush2.msra.mxu0 0.0
    %947 = vmatprep.subr.mxu0 0.0
    %948 = vmatpush2.msra.mxu0 0.0
    %949 = vmatprep.mubr.f32.mxu0 0.0
    %950 = vmatmul.mubr.f32.gmra.mxu0 %v874
    %v951 = vpop.f32.mrf.mxu0
    %v952 = vadd.f32 0.0, %v951
    %v953 = vpop.f32.mrf.mxu0
    %954 = vmatprep.mubr.f32.mxu0 0.0
    %955 = vmatmul.mubr.f32.gmra.mxu0 %v877
    %v956 = vpop.f32.mrf.mxu0
    %v957 = vadd.f32 0.0, %v956
    %v958 = vpop.f32.mrf.mxu0
    %959 = vmatprep.mubr.f32.mxu0 0.0
    %960 = vmatmul.mubr.f32.gmra.mxu0 %v880
    %v961 = vpop.f32.mrf.mxu0
    %v962 = vadd.f32 0.0, %v961
    %v963 = vpop.f32.mrf.mxu0
    %964 = vmatprep.mubr.f32.mxu0 0.0
    %965 = vmatmul.mubr.f32.gmra.mxu0 %v883
    %v966 = vpop.f32.mrf.mxu0
    %v967 = vadd.f32 0.0, %v966
    %v968 = vpop.f32.mrf.mxu0
    %969 = vdwg.mxu0
    %v971 = vsel %vm153, %v554, 0
    %v974 = vsel %vm153, %v555, 0
    %v977 = vsel %vm153, %v556, 0
    %v980 = vsel %vm153, %v557, 0
    %982 = vmatprep.subr.mxu0 0.0
    %983 = vmatpush1.msra.mxu0 0.0
    %984 = vmatprep.subr.mxu0 0.0
    %985 = vmatpush1.msra.mxu0 0.0
    %986 = vmatprep.subr.mxu0 0.0
    %987 = vmatpush1.msra.mxu0 0.0
    %988 = vmatprep.subr.mxu0 0.0
    %989 = vmatpush1.msra.mxu0 0.0
    %990 = vmatprep.subr.mxu0 0.0
    %991 = vmatpush1.msra.mxu0 0.0
    %992 = vmatprep.subr.mxu0 0.0
    %993 = vmatpush1.msra.mxu0 0.0
    %994 = vmatprep.subr.mxu0 0.0
    %995 = vmatpush1.msra.mxu0 0.0
    %996 = vmatprep.subr.mxu0 0.0
    %997 = vmatpush1.msra.mxu0 0.0
    %998 = vmatprep.subr.mxu0 0.0
    %999 = vmatpush1.msra.mxu0 0.0
    %1000 = vmatprep.subr.mxu0 0.0
    %1001 = vmatpush1.msra.mxu0 0.0
    %1002 = vmatprep.subr.mxu0 0.0
    %1003 = vmatpush1.msra.mxu0 0.0
    %1004 = vmatprep.subr.mxu0 0.0
    %1005 = vmatpush1.msra.mxu0 0.0
    %1006 = vmatprep.subr.mxu0 0.0
    %1007 = vmatpush1.msra.mxu0 %v124
    %1008 = vmatprep.subr.mxu0 0.0
    %1009 = vmatpush1.msra.mxu0 %v123
    %1010 = vmatprep.subr.mxu0 0.0
    %1011 = vmatpush1.msra.mxu0 %v122
    %1012 = vmatprep.subr.mxu0 0.0
    %1013 = vmatpush1.msra.mxu0 %v121
    %1014 = vmatprep.subr.mxu0 0.0
    %1015 = vmatpush2.msra.mxu0 0.0
    %1016 = vmatprep.subr.mxu0 0.0
    %1017 = vmatpush2.msra.mxu0 0.0
    %1018 = vmatprep.subr.mxu0 0.0
    %1019 = vmatpush2.msra.mxu0 0.0
    %1020 = vmatprep.subr.mxu0 0.0
    %1021 = vmatpush2.msra.mxu0 0.0
    %1022 = vmatprep.subr.mxu0 0.0
    %1023 = vmatpush2.msra.mxu0 0.0
    %1024 = vmatprep.subr.mxu0 0.0
    %1025 = vmatpush2.msra.mxu0 0.0
    %1026 = vmatprep.subr.mxu0 0.0
    %1027 = vmatpush2.msra.mxu0 0.0
    %1028 = vmatprep.subr.mxu0 0.0
    %1029 = vmatpush2.msra.mxu0 0.0
    %1030 = vmatprep.subr.mxu0 0.0
    %1031 = vmatpush2.msra.mxu0 0.0
    %1032 = vmatprep.subr.mxu0 0.0
    %1033 = vmatpush2.msra.mxu0 0.0
    %1034 = vmatprep.subr.mxu0 0.0
    %1035 = vmatpush2.msra.mxu0 0.0
    %1036 = vmatprep.subr.mxu0 0.0
    %1037 = vmatpush2.msra.mxu0 0.0
    %1038 = vmatprep.subr.mxu0 0.0
    %1039 = vmatpush2.msra.mxu0 0.0
    %1040 = vmatprep.subr.mxu0 0.0
    %1041 = vmatpush2.msra.mxu0 0.0
    %1042 = vmatprep.subr.mxu0 0.0
    %1043 = vmatpush2.msra.mxu0 0.0
    %1044 = vmatprep.subr.mxu0 0.0
    %1045 = vmatpush2.msra.mxu0 0.0
    %1046 = vmatprep.mubr.f32.mxu0 0.0
    %1047 = vmatmul.mubr.f32.gmra.mxu0 %v971
    %v1048 = vpop.f32.mrf.mxu0
    %v1049 = vadd.f32 %v952, %v1048
    %v1050 = vpop.f32.mrf.mxu0
    %1051 = vmatprep.mubr.f32.mxu0 0.0
    %1052 = vmatmul.mubr.f32.gmra.mxu0 %v974
    %v1053 = vpop.f32.mrf.mxu0
    %v1054 = vadd.f32 %v957, %v1053
    %v1055 = vpop.f32.mrf.mxu0
    %1056 = vmatprep.mubr.f32.mxu0 0.0
    %1057 = vmatmul.mubr.f32.gmra.mxu0 %v977
    %v1058 = vpop.f32.mrf.mxu0
    %v1059 = vadd.f32 %v962, %v1058
    %v1060 = vpop.f32.mrf.mxu0
    %1061 = vmatprep.mubr.f32.mxu0 0.0
    %1062 = vmatmul.mubr.f32.gmra.mxu0 %v980
    %v1063 = vpop.f32.mrf.mxu0
    %v1064 = vadd.f32 %v967, %v1063
    %v1065 = vpop.f32.mrf.mxu0
    %1066 = vdwg.mxu0
    %v1067 = vlaneseq
    %v1068 = vshrl.u32 %v1067, 7
    %v1069 = vsub.s32 1, %v1068
    %v1070 = vrot.slane %v129, %v1069
    %1071 = vrot.lane.b32.xlu0 %v552, 64
    %v1072 = vpop.permute.xlu0 %1071
    %1073 = vrot.lane.b32.xlu0 %v1070, 64
    %v1074 = vpop.permute.xlu0 %1073
    %vm1075 = vcmask 523264
    %v1076 = vsel %vm1075, %v1072, %v1074
    %v1078 = vadd.f32 %v1049, %v1076
    %v1079 = vadd.f32 %v1054, %v1076
    %v1080 = vadd.f32 %v1059, %v1076
    %v1081 = vadd.f32 %v1064, %v1076
    %1082 = vrot.lane.b32.xlu0 %v233, 64
    %v1083 = vpop.permute.xlu0 %1082
    %1084 = vrot.lane.b32.xlu0 %v239, 64
    %v1085 = vpop.permute.xlu0 %1084
    %1086 = vrot.lane.b32.xlu0 %v245, 64
    %v1087 = vpop.permute.xlu0 %1086
    %1088 = vrot.lane.b32.xlu0 %v251, 64
    %v1089 = vpop.permute.xlu0 %1088
    %v1094 = vadd.f32 %v1078, %v1083
    %v1095 = vadd.f32 %v1079, %v1085
    %v1096 = vadd.f32 %v1080, %v1087
    %v1097 = vadd.f32 %v1081, %v1089
    %v1098 = vxor.u32 %v1094, 2147483648
    %v1099 = vxor.u32 %v1095, 2147483648
    %v1100 = vxor.u32 %v1096, 2147483648
    %v1101 = vxor.u32 %v1097, 2147483648
    %v1102 = vmul.f32 %v1098, 1.442695
    %v1103 = vpow.pop %v1102
    %v1104 = vmul.f32 %v1099, 1.442695
    %v1105 = vpow.pop %v1104
    %v1106 = vmul.f32 %v1100, 1.442695
    %v1107 = vpow.pop %v1106
    %v1108 = vmul.f32 %v1101, 1.442695
    %v1109 = vpow.pop %v1108
    %v1110 = vadd.f32 %v1103, 1.0
    %v1111 = vadd.f32 %v1105, 1.0
    %v1112 = vadd.f32 %v1107, 1.0
    %v1113 = vadd.f32 %v1109, 1.0
    %v1114 = vrcp.pop %v1110
    %v1115 = vmul.f32 1.0, %v1114
    %v1116 = vrcp.pop %v1111
    %v1117 = vmul.f32 1.0, %v1116
    %v1118 = vrcp.pop %v1112
    %v1119 = vmul.f32 1.0, %v1118
    %v1120 = vrcp.pop %v1113
    %v1121 = vmul.f32 1.0, %v1120
    %v1122 = vmul.f32 %v1115, %v235
    %v1123 = vmul.f32 %v1117, %v241
    %v1124 = vmul.f32 %v1119, %v247
    %v1125 = vmul.f32 %v1121, %v253
    %1130 = vrot.lane.b32.xlu0 %v1122, 64
    %v1131 = vpop.permute.xlu0 %1130
    %1132 = vrot.lane.b32.xlu0 %v1123, 64
    %v1133 = vpop.permute.xlu0 %1132
    %1134 = vrot.lane.b32.xlu0 %v1124, 64
    %v1135 = vpop.permute.xlu0 %1134
    %1136 = vrot.lane.b32.xlu0 %v1125, 64
    %v1137 = vpop.permute.xlu0 %1136
    %v1142 = vadd.f32 %v1078, %v1131
    %v1143 = vadd.f32 %v1079, %v1133
    %v1144 = vadd.f32 %v1080, %v1135
    %v1145 = vadd.f32 %v1081, %v1137
    %v1146 = vtanh.pop %v1142
    %v1147 = vtanh.pop %v1143
    %v1148 = vtanh.pop %v1144
    %v1149 = vtanh.pop %v1145
    %1154 = vrot.lane.b32.xlu0 %v1146, 64
    %v1155 = vpop.permute.xlu0 %1154
    %1156 = vrot.lane.b32.xlu0 %v1147, 64
    %v1157 = vpop.permute.xlu0 %1156
    %1158 = vrot.lane.b32.xlu0 %v1148, 64
    %v1159 = vpop.permute.xlu0 %1158
    %1160 = vrot.lane.b32.xlu0 %v1149, 64
    %v1161 = vpop.permute.xlu0 %1160
    %v1166 = vsub.f32 %v138, %v1155
    %v1167 = vsub.f32 %v139, %v1157
    %v1168 = vsub.f32 %v140, %v1159
    %v1169 = vsub.f32 %v141, %v1161
    %1174 = vrot.lane.b32.xlu0 %v1166, 32
    %v1175 = vpop.permute.xlu0 %1174
    %1176 = vrot.lane.b32.xlu0 %v1167, 32
    %v1177 = vpop.permute.xlu0 %1176
    %1178 = vrot.lane.b32.xlu0 %v1168, 32
    %v1179 = vpop.permute.xlu0 %1178
    %1180 = vrot.lane.b32.xlu0 %v1169, 32
    %v1181 = vpop.permute.xlu0 %1180
    %v1186 = vmul.f32 %v1115, %v1175
    %v1187 = vmul.f32 %v1117, %v1177
    %v1188 = vmul.f32 %v1119, %v1179
    %v1189 = vmul.f32 %v1121, %v1181
    %1194 = vrot.lane.b32.xlu0 %v1186, 32
    %v1195 = vpop.permute.xlu0 %1194
    %1196 = vrot.lane.b32.xlu0 %v1187, 32
    %v1197 = vpop.permute.xlu0 %1196
    %1198 = vrot.lane.b32.xlu0 %v1188, 32
    %v1199 = vpop.permute.xlu0 %1198
    %1200 = vrot.lane.b32.xlu0 %v1189, 32
    %v1201 = vpop.permute.xlu0 %1200
    %v1206 = vadd.f32 %v1146, %v1195
    %v1207 = vadd.f32 %v1147, %v1197
    %v1208 = vadd.f32 %v1148, %v1199
    %v1209 = vadd.f32 %v1149, %v1201
    %1214 = vrot.lane.b32.xlu0 %v1206, 64
    %v1215 = vpop.permute.xlu0 %1214
    %1216 = vrot.lane.b32.xlu0 %v1207, 64
    %v1217 = vpop.permute.xlu0 %1216
    %1218 = vrot.lane.b32.xlu0 %v1208, 64
    %v1219 = vpop.permute.xlu0 %1218
    %1220 = vrot.lane.b32.xlu0 %v1209, 64
    %v1221 = vpop.permute.xlu0 %1220
    %v1222 = vsel %vm153, %v1215, 0
    %v1224 = vsel %vm153, %v1217, 0
    %v1226 = vsel %vm153, %v1219, 0
    %v1228 = vsel %vm153, %v1221, 0
    %1230 = vmatprep.subr.mxu0 0.0
    %1231 = vmatpush1.msra.mxu0 0.0
    %1232 = vmatprep.subr.mxu0 0.0
    %1233 = vmatpush1.msra.mxu0 0.0
    %1234 = vmatprep.subr.mxu0 0.0
    %1235 = vmatpush1.msra.mxu0 0.0
    %1236 = vmatprep.subr.mxu0 0.0
    %1237 = vmatpush1.msra.mxu0 0.0
    %1238 = vmatprep.subr.mxu0 0.0
    %1239 = vmatpush1.msra.mxu0 0.0
    %1240 = vmatprep.subr.mxu0 0.0
    %1241 = vmatpush1.msra.mxu0 0.0
    %1242 = vmatprep.subr.mxu0 0.0
    %1243 = vmatpush1.msra.mxu0 0.0
    %1244 = vmatprep.subr.mxu0 0.0
    %1245 = vmatpush1.msra.mxu0 0.0
    %1246 = vmatprep.subr.mxu0 0.0
    %1247 = vmatpush1.msra.mxu0 0.0
    %1248 = vmatprep.subr.mxu0 0.0
    %1249 = vmatpush1.msra.mxu0 0.0
    %1250 = vmatprep.subr.mxu0 0.0
    %1251 = vmatpush1.msra.mxu0 0.0
    %1252 = vmatprep.subr.mxu0 0.0
    %1253 = vmatpush1.msra.mxu0 0.0
    %1254 = vmatprep.subr.mxu0 %v119
    %1255 = vmatpush1.msra.mxu0 %v118
    %1256 = vmatprep.subr.mxu0 %v117
    %1257 = vmatpush1.msra.mxu0 %v116
    %1258 = vmatprep.subr.mxu0 %v115
    %1259 = vmatpush1.msra.mxu0 %v114
    %1260 = vmatprep.subr.mxu0 %v113
    %1261 = vmatpush1.msra.mxu0 %v112
    %1262 = vmatprep.subr.mxu0 0.0
    %1263 = vmatpush2.msra.mxu0 0.0
    %1264 = vmatprep.subr.mxu0 0.0
    %1265 = vmatpush2.msra.mxu0 0.0
    %1266 = vmatprep.subr.mxu0 0.0
    %1267 = vmatpush2.msra.mxu0 0.0
    %1268 = vmatprep.subr.mxu0 0.0
    %1269 = vmatpush2.msra.mxu0 0.0
    %1270 = vmatprep.subr.mxu0 0.0
    %1271 = vmatpush2.msra.mxu0 0.0
    %1272 = vmatprep.subr.mxu0 0.0
    %1273 = vmatpush2.msra.mxu0 0.0
    %1274 = vmatprep.subr.mxu0 0.0
    %1275 = vmatpush2.msra.mxu0 0.0
    %1276 = vmatprep.subr.mxu0 0.0
    %1277 = vmatpush2.msra.mxu0 0.0
    %1278 = vmatprep.subr.mxu0 0.0
    %1279 = vmatpush2.msra.mxu0 0.0
    %1280 = vmatprep.subr.mxu0 0.0
    %1281 = vmatpush2.msra.mxu0 0.0
    %1282 = vmatprep.subr.mxu0 0.0
    %1283 = vmatpush2.msra.mxu0 0.0
    %1284 = vmatprep.subr.mxu0 0.0
    %1285 = vmatpush2.msra.mxu0 0.0
    %1286 = vmatprep.subr.mxu0 0.0
    %1287 = vmatpush2.msra.mxu0 0.0
    %1288 = vmatprep.subr.mxu0 0.0
    %1289 = vmatpush2.msra.mxu0 0.0
    %1290 = vmatprep.subr.mxu0 0.0
    %1291 = vmatpush2.msra.mxu0 0.0
    %1292 = vmatprep.subr.mxu0 0.0
    %1293 = vmatpush2.msra.mxu0 0.0
    %1294 = vmatprep.mubr.f32.mxu0 0.0
    %1295 = vmatmul.mubr.f32.gmra.mxu0 %v1222
    %v1296 = vpop.f32.mrf.mxu0
    %v1297 = vadd.f32 %v146, %v1296
    %v1298 = vpop.f32.mrf.mxu0
    %v1299 = vadd.f32 %v150, %v1298
    %1300 = vmatprep.mubr.f32.mxu0 0.0
    %1301 = vmatmul.mubr.f32.gmra.mxu0 %v1224
    %v1302 = vpop.f32.mrf.mxu0
    %v1303 = vadd.f32 %v146, %v1302
    %v1304 = vpop.f32.mrf.mxu0
    %v1305 = vadd.f32 %v150, %v1304
    %1306 = vmatprep.mubr.f32.mxu0 0.0
    %1307 = vmatmul.mubr.f32.gmra.mxu0 %v1226
    %v1308 = vpop.f32.mrf.mxu0
    %v1309 = vadd.f32 %v146, %v1308
    %v1310 = vpop.f32.mrf.mxu0
    %v1311 = vadd.f32 %v150, %v1310
    %1312 = vmatprep.mubr.f32.mxu0 0.0
    %1313 = vmatmul.mubr.f32.gmra.mxu0 %v1228
    %v1314 = vpop.f32.mrf.mxu0
    %v1315 = vadd.f32 %v146, %v1314
    %v1316 = vpop.f32.mrf.mxu0
    %v1317 = vadd.f32 %v150, %v1316
    %1318 = vdwg.mxu0
    %1319 = vmatprep.subr.mxu0 0.0
    %1320 = vmatpush1.msra.mxu0 0.0
    %1321 = vmatprep.subr.mxu0 0.0
    %1322 = vmatpush1.msra.mxu0 0.0
    %1323 = vmatprep.subr.mxu0 0.0
    %1324 = vmatpush1.msra.mxu0 0.0
    %1325 = vmatprep.subr.mxu0 0.0
    %1326 = vmatpush1.msra.mxu0 0.0
    %1327 = vmatprep.subr.mxu0 0.0
    %1328 = vmatpush1.msra.mxu0 0.0
    %1329 = vmatprep.subr.mxu0 0.0
    %1330 = vmatpush1.msra.mxu0 0.0
    %1331 = vmatprep.subr.mxu0 0.0
    %1332 = vmatpush1.msra.mxu0 0.0
    %1333 = vmatprep.subr.mxu0 0.0
    %1334 = vmatpush1.msra.mxu0 0.0
    %1335 = vmatprep.subr.mxu0 0.0
    %1336 = vmatpush1.msra.mxu0 0.0
    %1337 = vmatprep.subr.mxu0 0.0
    %1338 = vmatpush1.msra.mxu0 0.0
    %1339 = vmatprep.subr.mxu0 0.0
    %1340 = vmatpush1.msra.mxu0 0.0
    %1341 = vmatprep.subr.mxu0 0.0
    %1342 = vmatpush1.msra.mxu0 0.0
    %1343 = vmatprep.subr.mxu0 0.0
    %1344 = vmatpush1.msra.mxu0 0.0
    %1345 = vmatprep.subr.mxu0 0.0
    %1346 = vmatpush1.msra.mxu0 0.0
    %1347 = vmatprep.subr.mxu0 0.0
    %1348 = vmatpush1.msra.mxu0 0.0
    %1349 = vmatprep.subr.mxu0 0.0
    %1350 = vmatpush1.msra.mxu0 %v1297
    %1351 = vmatprep.subr.mxu0 0.0
    %1352 = vmatpush2.msra.mxu0 0.0
    %1353 = vmatprep.subr.mxu0 0.0
    %1354 = vmatpush2.msra.mxu0 0.0
    %1355 = vmatprep.subr.mxu0 0.0
    %1356 = vmatpush2.msra.mxu0 0.0
    %1357 = vmatprep.subr.mxu0 0.0
    %1358 = vmatpush2.msra.mxu0 0.0
    %1359 = vmatprep.subr.mxu0 0.0
    %1360 = vmatpush2.msra.mxu0 0.0
    %1361 = vmatprep.subr.mxu0 0.0
    %1362 = vmatpush2.msra.mxu0 0.0
    %1363 = vmatprep.subr.mxu0 0.0
    %1364 = vmatpush2.msra.mxu0 0.0
    %1365 = vmatprep.subr.mxu0 0.0
    %1366 = vmatpush2.msra.mxu0 0.0
    %1367 = vmatprep.subr.mxu0 0.0
    %1368 = vmatpush2.msra.mxu0 0.0
    %1369 = vmatprep.subr.mxu0 0.0
    %1370 = vmatpush2.msra.mxu0 0.0
    %1371 = vmatprep.subr.mxu0 0.0
    %1372 = vmatpush2.msra.mxu0 0.0
    %1373 = vmatprep.subr.mxu0 0.0
    %1374 = vmatpush2.msra.mxu0 0.0
    %1375 = vmatprep.subr.mxu0 0.0
    %1376 = vmatpush2.msra.mxu0 0.0
    %1377 = vmatprep.subr.mxu0 0.0
    %1378 = vmatpush2.msra.mxu0 0.0
    %1379 = vmatprep.subr.mxu0 0.0
    %1380 = vmatpush2.msra.mxu0 0.0
    %1381 = vmatprep.subr.mxu0 0.0
    %1382 = vmatpush2.msra.mxu0 0.0
    %1383 = vmatprep.mubr.f32.mxu0 0.0
    %1384 = vmatmul.mubr.f32.gmra.mxu0 %v257
    %v1385 = vpop.f32.mrf.mxu0
    %v1386 = vadd.f32 0.0, %v1385
    %v1387 = vpop.f32.mrf.mxu0
    %1388 = vdwg.mxu0
    %1389 = vmatprep.subr.mxu0 0.0
    %1390 = vmatpush1.msra.mxu0 0.0
    %1391 = vmatprep.subr.mxu0 0.0
    %1392 = vmatpush1.msra.mxu0 0.0
    %1393 = vmatprep.subr.mxu0 0.0
    %1394 = vmatpush1.msra.mxu0 0.0
    %1395 = vmatprep.subr.mxu0 0.0
    %1396 = vmatpush1.msra.mxu0 0.0
    %1397 = vmatprep.subr.mxu0 0.0
    %1398 = vmatpush1.msra.mxu0 0.0
    %1399 = vmatprep.subr.mxu0 0.0
    %1400 = vmatpush1.msra.mxu0 0.0
    %1401 = vmatprep.subr.mxu0 0.0
    %1402 = vmatpush1.msra.mxu0 0.0
    %1403 = vmatprep.subr.mxu0 0.0
    %1404 = vmatpush1.msra.mxu0 0.0
    %1405 = vmatprep.subr.mxu0 0.0
    %1406 = vmatpush1.msra.mxu0 0.0
    %1407 = vmatprep.subr.mxu0 0.0
    %1408 = vmatpush1.msra.mxu0 0.0
    %1409 = vmatprep.subr.mxu0 0.0
    %1410 = vmatpush1.msra.mxu0 0.0
    %1411 = vmatprep.subr.mxu0 0.0
    %1412 = vmatpush1.msra.mxu0 0.0
    %1413 = vmatprep.subr.mxu0 0.0
    %1414 = vmatpush1.msra.mxu0 0.0
    %1415 = vmatprep.subr.mxu0 0.0
    %1416 = vmatpush1.msra.mxu0 0.0
    %1417 = vmatprep.subr.mxu0 0.0
    %1418 = vmatpush1.msra.mxu0 0.0
    %1419 = vmatprep.subr.mxu0 0.0
    %1420 = vmatpush1.msra.mxu0 %v1303
    %1421 = vmatprep.subr.mxu0 0.0
    %1422 = vmatpush2.msra.mxu0 0.0
    %1423 = vmatprep.subr.mxu0 0.0
    %1424 = vmatpush2.msra.mxu0 0.0
    %1425 = vmatprep.subr.mxu0 0.0
    %1426 = vmatpush2.msra.mxu0 0.0
    %1427 = vmatprep.subr.mxu0 0.0
    %1428 = vmatpush2.msra.mxu0 0.0
    %1429 = vmatprep.subr.mxu0 0.0
    %1430 = vmatpush2.msra.mxu0 0.0
    %1431 = vmatprep.subr.mxu0 0.0
    %1432 = vmatpush2.msra.mxu0 0.0
    %1433 = vmatprep.subr.mxu0 0.0
    %1434 = vmatpush2.msra.mxu0 0.0
    %1435 = vmatprep.subr.mxu0 0.0
    %1436 = vmatpush2.msra.mxu0 0.0
    %1437 = vmatprep.subr.mxu0 0.0
    %1438 = vmatpush2.msra.mxu0 0.0
    %1439 = vmatprep.subr.mxu0 0.0
    %1440 = vmatpush2.msra.mxu0 0.0
    %1441 = vmatprep.subr.mxu0 0.0
    %1442 = vmatpush2.msra.mxu0 0.0
    %1443 = vmatprep.subr.mxu0 0.0
    %1444 = vmatpush2.msra.mxu0 0.0
    %1445 = vmatprep.subr.mxu0 0.0
    %1446 = vmatpush2.msra.mxu0 0.0
    %1447 = vmatprep.subr.mxu0 0.0
    %1448 = vmatpush2.msra.mxu0 0.0
    %1449 = vmatprep.subr.mxu0 0.0
    %1450 = vmatpush2.msra.mxu0 0.0
    %1451 = vmatprep.subr.mxu0 0.0
    %1452 = vmatpush2.msra.mxu0 0.0
    %1453 = vmatprep.mubr.f32.mxu0 0.0
    %1454 = vmatmul.mubr.f32.gmra.mxu0 %v330
    %v1455 = vpop.f32.mrf.mxu0
    %v1456 = vadd.f32 0.0, %v1455
    %v1457 = vpop.f32.mrf.mxu0
    %1458 = vdwg.mxu0
    %1459 = vmatprep.subr.mxu0 0.0
    %1460 = vmatpush1.msra.mxu0 0.0
    %1461 = vmatprep.subr.mxu0 0.0
    %1462 = vmatpush1.msra.mxu0 0.0
    %1463 = vmatprep.subr.mxu0 0.0
    %1464 = vmatpush1.msra.mxu0 0.0
    %1465 = vmatprep.subr.mxu0 0.0
    %1466 = vmatpush1.msra.mxu0 0.0
    %1467 = vmatprep.subr.mxu0 0.0
    %1468 = vmatpush1.msra.mxu0 0.0
    %1469 = vmatprep.subr.mxu0 0.0
    %1470 = vmatpush1.msra.mxu0 0.0
    %1471 = vmatprep.subr.mxu0 0.0
    %1472 = vmatpush1.msra.mxu0 0.0
    %1473 = vmatprep.subr.mxu0 0.0
    %1474 = vmatpush1.msra.mxu0 0.0
    %1475 = vmatprep.subr.mxu0 0.0
    %1476 = vmatpush1.msra.mxu0 0.0
    %1477 = vmatprep.subr.mxu0 0.0
    %1478 = vmatpush1.msra.mxu0 0.0
    %1479 = vmatprep.subr.mxu0 0.0
    %1480 = vmatpush1.msra.mxu0 0.0
    %1481 = vmatprep.subr.mxu0 0.0
    %1482 = vmatpush1.msra.mxu0 0.0
    %1483 = vmatprep.subr.mxu0 0.0
    %1484 = vmatpush1.msra.mxu0 0.0
    %1485 = vmatprep.subr.mxu0 0.0
    %1486 = vmatpush1.msra.mxu0 0.0
    %1487 = vmatprep.subr.mxu0 0.0
    %1488 = vmatpush1.msra.mxu0 0.0
    %1489 = vmatprep.subr.mxu0 0.0
    %1490 = vmatpush1.msra.mxu0 %v1309
    %1491 = vmatprep.subr.mxu0 0.0
    %1492 = vmatpush2.msra.mxu0 0.0
    %1493 = vmatprep.subr.mxu0 0.0
    %1494 = vmatpush2.msra.mxu0 0.0
    %1495 = vmatprep.subr.mxu0 0.0
    %1496 = vmatpush2.msra.mxu0 0.0
    %1497 = vmatprep.subr.mxu0 0.0
    %1498 = vmatpush2.msra.mxu0 0.0
    %1499 = vmatprep.subr.mxu0 0.0
    %1500 = vmatpush2.msra.mxu0 0.0
    %1501 = vmatprep.subr.mxu0 0.0
    %1502 = vmatpush2.msra.mxu0 0.0
    %1503 = vmatprep.subr.mxu0 0.0
    %1504 = vmatpush2.msra.mxu0 0.0
    %1505 = vmatprep.subr.mxu0 0.0
    %1506 = vmatpush2.msra.mxu0 0.0
    %1507 = vmatprep.subr.mxu0 0.0
    %1508 = vmatpush2.msra.mxu0 0.0
    %1509 = vmatprep.subr.mxu0 0.0
    %1510 = vmatpush2.msra.mxu0 0.0
    %1511 = vmatprep.subr.mxu0 0.0
    %1512 = vmatpush2.msra.mxu0 0.0
    %1513 = vmatprep.subr.mxu0 0.0
    %1514 = vmatpush2.msra.mxu0 0.0
    %1515 = vmatprep.subr.mxu0 0.0
    %1516 = vmatpush2.msra.mxu0 0.0
    %1517 = vmatprep.subr.mxu0 0.0
    %1518 = vmatpush2.msra.mxu0 0.0
    %1519 = vmatprep.subr.mxu0 0.0
    %1520 = vmatpush2.msra.mxu0 0.0
    %1521 = vmatprep.subr.mxu0 0.0
    %1522 = vmatpush2.msra.mxu0 0.0
    %1523 = vmatprep.mubr.f32.mxu0 0.0
    %1524 = vmatmul.mubr.f32.gmra.mxu0 %v403
    %v1525 = vpop.f32.mrf.mxu0
    %v1526 = vadd.f32 0.0, %v1525
    %v1527 = vpop.f32.mrf.mxu0
    %1528 = vdwg.mxu0
    %1529 = vmatprep.subr.mxu0 0.0
    %1530 = vmatpush1.msra.mxu0 0.0
    %1531 = vmatprep.subr.mxu0 0.0
    %1532 = vmatpush1.msra.mxu0 0.0
    %1533 = vmatprep.subr.mxu0 0.0
    %1534 = vmatpush1.msra.mxu0 0.0
    %1535 = vmatprep.subr.mxu0 0.0
    %1536 = vmatpush1.msra.mxu0 0.0
    %1537 = vmatprep.subr.mxu0 0.0
    %1538 = vmatpush1.msra.mxu0 0.0
    %1539 = vmatprep.subr.mxu0 0.0
    %1540 = vmatpush1.msra.mxu0 0.0
    %1541 = vmatprep.subr.mxu0 0.0
    %1542 = vmatpush1.msra.mxu0 0.0
    %1543 = vmatprep.subr.mxu0 0.0
    %1544 = vmatpush1.msra.mxu0 0.0
    %1545 = vmatprep.subr.mxu0 0.0
    %1546 = vmatpush1.msra.mxu0 0.0
    %1547 = vmatprep.subr.mxu0 0.0
    %1548 = vmatpush1.msra.mxu0 0.0
    %1549 = vmatprep.subr.mxu0 0.0
    %1550 = vmatpush1.msra.mxu0 0.0
    %1551 = vmatprep.subr.mxu0 0.0
    %1552 = vmatpush1.msra.mxu0 0.0
    %1553 = vmatprep.subr.mxu0 0.0
    %1554 = vmatpush1.msra.mxu0 0.0
    %1555 = vmatprep.subr.mxu0 0.0
    %1556 = vmatpush1.msra.mxu0 0.0
    %1557 = vmatprep.subr.mxu0 0.0
    %1558 = vmatpush1.msra.mxu0 0.0
    %1559 = vmatprep.subr.mxu0 0.0
    %1560 = vmatpush1.msra.mxu0 %v1315
    %1561 = vmatprep.subr.mxu0 0.0
    %1562 = vmatpush2.msra.mxu0 0.0
    %1563 = vmatprep.subr.mxu0 0.0
    %1564 = vmatpush2.msra.mxu0 0.0
    %1565 = vmatprep.subr.mxu0 0.0
    %1566 = vmatpush2.msra.mxu0 0.0
    %1567 = vmatprep.subr.mxu0 0.0
    %1568 = vmatpush2.msra.mxu0 0.0
    %1569 = vmatprep.subr.mxu0 0.0
    %1570 = vmatpush2.msra.mxu0 0.0
    %1571 = vmatprep.subr.mxu0 0.0
    %1572 = vmatpush2.msra.mxu0 0.0
    %1573 = vmatprep.subr.mxu0 0.0
    %1574 = vmatpush2.msra.mxu0 0.0
    %1575 = vmatprep.subr.mxu0 0.0
    %1576 = vmatpush2.msra.mxu0 0.0
    %1577 = vmatprep.subr.mxu0 0.0
    %1578 = vmatpush2.msra.mxu0 0.0
    %1579 = vmatprep.subr.mxu0 0.0
    %1580 = vmatpush2.msra.mxu0 0.0
    %1581 = vmatprep.subr.mxu0 0.0
    %1582 = vmatpush2.msra.mxu0 0.0
    %1583 = vmatprep.subr.mxu0 0.0
    %1584 = vmatpush2.msra.mxu0 0.0
    %1585 = vmatprep.subr.mxu0 0.0
    %1586 = vmatpush2.msra.mxu0 0.0
    %1587 = vmatprep.subr.mxu0 0.0
    %1588 = vmatpush2.msra.mxu0 0.0
    %1589 = vmatprep.subr.mxu0 0.0
    %1590 = vmatpush2.msra.mxu0 0.0
    %1591 = vmatprep.subr.mxu0 0.0
    %1592 = vmatpush2.msra.mxu0 0.0
    %1593 = vmatprep.mubr.f32.mxu0 0.0
    %1594 = vmatmul.mubr.f32.gmra.mxu0 %v476
    %v1595 = vpop.f32.mrf.mxu0
    %v1596 = vadd.f32 0.0, %v1595
    %v1597 = vpop.f32.mrf.mxu0
    %1598 = vdwg.mxu0
    %v1599 = vadd.f32 %v1386, %v552
    %v1600 = vadd.f32 %v1456, %v552
    %v1601 = vadd.f32 %v1526, %v552
    %v1602 = vadd.f32 %v1596, %v552
    %1604 = vrot.lane.b32.xlu0 %v1297, 96
    %v1605 = vpop.permute.xlu0 %1604
    %1607 = vmatprep.subr.mxu0 0.0
    %1608 = vmatpush1.msra.mxu0 0.0
    %1609 = vmatprep.subr.mxu0 0.0
    %1610 = vmatpush1.msra.mxu0 0.0
    %1611 = vmatprep.subr.mxu0 0.0
    %1612 = vmatpush1.msra.mxu0 0.0
    %1613 = vmatprep.subr.mxu0 0.0
    %1614 = vmatpush1.msra.mxu0 0.0
    %1615 = vmatprep.subr.mxu0 0.0
    %1616 = vmatpush1.msra.mxu0 0.0
    %1617 = vmatprep.subr.mxu0 0.0
    %1618 = vmatpush1.msra.mxu0 0.0
    %1619 = vmatprep.subr.mxu0 0.0
    %1620 = vmatpush1.msra.mxu0 0.0
    %1621 = vmatprep.subr.mxu0 0.0
    %1622 = vmatpush1.msra.mxu0 0.0
    %1623 = vmatprep.subr.mxu0 0.0
    %1624 = vmatpush1.msra.mxu0 0.0
    %1625 = vmatprep.subr.mxu0 0.0
    %1626 = vmatpush1.msra.mxu0 0.0
    %1627 = vmatprep.subr.mxu0 0.0
    %1628 = vmatpush1.msra.mxu0 0.0
    %1629 = vmatprep.subr.mxu0 0.0
    %1630 = vmatpush1.msra.mxu0 0.0
    %1631 = vmatprep.subr.mxu0 0.0
    %1632 = vmatpush1.msra.mxu0 0.0
    %1633 = vmatprep.subr.mxu0 0.0
    %1634 = vmatpush1.msra.mxu0 0.0
    %1635 = vmatprep.subr.mxu0 0.0
    %1636 = vmatpush1.msra.mxu0 0.0
    %1637 = vmatprep.subr.mxu0 0.0
    %1638 = vmatpush1.msra.mxu0 %v1605
    %1639 = vmatprep.subr.mxu0 0.0
    %1640 = vmatpush2.msra.mxu0 0.0
    %1641 = vmatprep.subr.mxu0 0.0
    %1642 = vmatpush2.msra.mxu0 0.0
    %1643 = vmatprep.subr.mxu0 0.0
    %1644 = vmatpush2.msra.mxu0 0.0
    %1645 = vmatprep.subr.mxu0 0.0
    %1646 = vmatpush2.msra.mxu0 0.0
    %1647 = vmatprep.subr.mxu0 0.0
    %1648 = vmatpush2.msra.mxu0 0.0
    %1649 = vmatprep.subr.mxu0 0.0
    %1650 = vmatpush2.msra.mxu0 0.0
    %1651 = vmatprep.subr.mxu0 0.0
    %1652 = vmatpush2.msra.mxu0 0.0
    %1653 = vmatprep.subr.mxu0 0.0
    %1654 = vmatpush2.msra.mxu0 0.0
    %1655 = vmatprep.subr.mxu0 0.0
    %1656 = vmatpush2.msra.mxu0 0.0
    %1657 = vmatprep.subr.mxu0 0.0
    %1658 = vmatpush2.msra.mxu0 0.0
    %1659 = vmatprep.subr.mxu0 0.0
    %1660 = vmatpush2.msra.mxu0 0.0
    %1661 = vmatprep.subr.mxu0 0.0
    %1662 = vmatpush2.msra.mxu0 0.0
    %1663 = vmatprep.subr.mxu0 0.0
    %1664 = vmatpush2.msra.mxu0 0.0
    %1665 = vmatprep.subr.mxu0 0.0
    %1666 = vmatpush2.msra.mxu0 0.0
    %1667 = vmatprep.subr.mxu0 0.0
    %1668 = vmatpush2.msra.mxu0 0.0
    %1669 = vmatprep.subr.mxu0 0.0
    %1670 = vmatpush2.msra.mxu0 0.0
    %1671 = vmatprep.mubr.f32.mxu0 0.0
    %1672 = vmatmul.mubr.f32.gmra.mxu0 %v563
    %v1673 = vpop.f32.mrf.mxu0
    %v1674 = vadd.f32 0.0, %v1673
    %v1675 = vpop.f32.mrf.mxu0
    %1676 = vdwg.mxu0
    %1678 = vrot.lane.b32.xlu0 %v1303, 96
    %v1679 = vpop.permute.xlu0 %1678
    %1681 = vmatprep.subr.mxu0 0.0
    %1682 = vmatpush1.msra.mxu0 0.0
    %1683 = vmatprep.subr.mxu0 0.0
    %1684 = vmatpush1.msra.mxu0 0.0
    %1685 = vmatprep.subr.mxu0 0.0
    %1686 = vmatpush1.msra.mxu0 0.0
    %1687 = vmatprep.subr.mxu0 0.0
    %1688 = vmatpush1.msra.mxu0 0.0
    %1689 = vmatprep.subr.mxu0 0.0
    %1690 = vmatpush1.msra.mxu0 0.0
    %1691 = vmatprep.subr.mxu0 0.0
    %1692 = vmatpush1.msra.mxu0 0.0
    %1693 = vmatprep.subr.mxu0 0.0
    %1694 = vmatpush1.msra.mxu0 0.0
    %1695 = vmatprep.subr.mxu0 0.0
    %1696 = vmatpush1.msra.mxu0 0.0
    %1697 = vmatprep.subr.mxu0 0.0
    %1698 = vmatpush1.msra.mxu0 0.0
    %1699 = vmatprep.subr.mxu0 0.0
    %1700 = vmatpush1.msra.mxu0 0.0
    %1701 = vmatprep.subr.mxu0 0.0
    %1702 = vmatpush1.msra.mxu0 0.0
    %1703 = vmatprep.subr.mxu0 0.0
    %1704 = vmatpush1.msra.mxu0 0.0
    %1705 = vmatprep.subr.mxu0 0.0
    %1706 = vmatpush1.msra.mxu0 0.0
    %1707 = vmatprep.subr.mxu0 0.0
    %1708 = vmatpush1.msra.mxu0 0.0
    %1709 = vmatprep.subr.mxu0 0.0
    %1710 = vmatpush1.msra.mxu0 0.0
    %1711 = vmatprep.subr.mxu0 0.0
    %1712 = vmatpush1.msra.mxu0 %v1679
    %1713 = vmatprep.subr.mxu0 0.0
    %1714 = vmatpush2.msra.mxu0 0.0
    %1715 = vmatprep.subr.mxu0 0.0
    %1716 = vmatpush2.msra.mxu0 0.0
    %1717 = vmatprep.subr.mxu0 0.0
    %1718 = vmatpush2.msra.mxu0 0.0
    %1719 = vmatprep.subr.mxu0 0.0
    %1720 = vmatpush2.msra.mxu0 0.0
    %1721 = vmatprep.subr.mxu0 0.0
    %1722 = vmatpush2.msra.mxu0 0.0
    %1723 = vmatprep.subr.mxu0 0.0
    %1724 = vmatpush2.msra.mxu0 0.0
    %1725 = vmatprep.subr.mxu0 0.0
    %1726 = vmatpush2.msra.mxu0 0.0
    %1727 = vmatprep.subr.mxu0 0.0
    %1728 = vmatpush2.msra.mxu0 0.0
    %1729 = vmatprep.subr.mxu0 0.0
    %1730 = vmatpush2.msra.mxu0 0.0
    %1731 = vmatprep.subr.mxu0 0.0
    %1732 = vmatpush2.msra.mxu0 0.0
    %1733 = vmatprep.subr.mxu0 0.0
    %1734 = vmatpush2.msra.mxu0 0.0
    %1735 = vmatprep.subr.mxu0 0.0
    %1736 = vmatpush2.msra.mxu0 0.0
    %1737 = vmatprep.subr.mxu0 0.0
    %1738 = vmatpush2.msra.mxu0 0.0
    %1739 = vmatprep.subr.mxu0 0.0
    %1740 = vmatpush2.msra.mxu0 0.0
    %1741 = vmatprep.subr.mxu0 0.0
    %1742 = vmatpush2.msra.mxu0 0.0
    %1743 = vmatprep.subr.mxu0 0.0
    %1744 = vmatpush2.msra.mxu0 0.0
    %1745 = vmatprep.mubr.f32.mxu0 0.0
    %1746 = vmatmul.mubr.f32.gmra.mxu0 %v640
    %v1747 = vpop.f32.mrf.mxu0
    %v1748 = vadd.f32 0.0, %v1747
    %v1749 = vpop.f32.mrf.mxu0
    %1750 = vdwg.mxu0
    %1752 = vrot.lane.b32.xlu0 %v1309, 96
    %v1753 = vpop.permute.xlu0 %1752
    %1755 = vmatprep.subr.mxu0 0.0
    %1756 = vmatpush1.msra.mxu0 0.0
    %1757 = vmatprep.subr.mxu0 0.0
    %1758 = vmatpush1.msra.mxu0 0.0
    %1759 = vmatprep.subr.mxu0 0.0
    %1760 = vmatpush1.msra.mxu0 0.0
    %1761 = vmatprep.subr.mxu0 0.0
    %1762 = vmatpush1.msra.mxu0 0.0
    %1763 = vmatprep.subr.mxu0 0.0
    %1764 = vmatpush1.msra.mxu0 0.0
    %1765 = vmatprep.subr.mxu0 0.0
    %1766 = vmatpush1.msra.mxu0 0.0
    %1767 = vmatprep.subr.mxu0 0.0
    %1768 = vmatpush1.msra.mxu0 0.0
    %1769 = vmatprep.subr.mxu0 0.0
    %1770 = vmatpush1.msra.mxu0 0.0
    %1771 = vmatprep.subr.mxu0 0.0
    %1772 = vmatpush1.msra.mxu0 0.0
    %1773 = vmatprep.subr.mxu0 0.0
    %1774 = vmatpush1.msra.mxu0 0.0
    %1775 = vmatprep.subr.mxu0 0.0
    %1776 = vmatpush1.msra.mxu0 0.0
    %1777 = vmatprep.subr.mxu0 0.0
    %1778 = vmatpush1.msra.mxu0 0.0
    %1779 = vmatprep.subr.mxu0 0.0
    %1780 = vmatpush1.msra.mxu0 0.0
    %1781 = vmatprep.subr.mxu0 0.0
    %1782 = vmatpush1.msra.mxu0 0.0
    %1783 = vmatprep.subr.mxu0 0.0
    %1784 = vmatpush1.msra.mxu0 0.0
    %1785 = vmatprep.subr.mxu0 0.0
    %1786 = vmatpush1.msra.mxu0 %v1753
    %1787 = vmatprep.subr.mxu0 0.0
    %1788 = vmatpush2.msra.mxu0 0.0
    %1789 = vmatprep.subr.mxu0 0.0
    %1790 = vmatpush2.msra.mxu0 0.0
    %1791 = vmatprep.subr.mxu0 0.0
    %1792 = vmatpush2.msra.mxu0 0.0
    %1793 = vmatprep.subr.mxu0 0.0
    %1794 = vmatpush2.msra.mxu0 0.0
    %1795 = vmatprep.subr.mxu0 0.0
    %1796 = vmatpush2.msra.mxu0 0.0
    %1797 = vmatprep.subr.mxu0 0.0
    %1798 = vmatpush2.msra.mxu0 0.0
    %1799 = vmatprep.subr.mxu0 0.0
    %1800 = vmatpush2.msra.mxu0 0.0
    %1801 = vmatprep.subr.mxu0 0.0
    %1802 = vmatpush2.msra.mxu0 0.0
    %1803 = vmatprep.subr.mxu0 0.0
    %1804 = vmatpush2.msra.mxu0 0.0
    %1805 = vmatprep.subr.mxu0 0.0
    %1806 = vmatpush2.msra.mxu0 0.0
    %1807 = vmatprep.subr.mxu0 0.0
    %1808 = vmatpush2.msra.mxu0 0.0
    %1809 = vmatprep.subr.mxu0 0.0
    %1810 = vmatpush2.msra.mxu0 0.0
    %1811 = vmatprep.subr.mxu0 0.0
    %1812 = vmatpush2.msra.mxu0 0.0
    %1813 = vmatprep.subr.mxu0 0.0
    %1814 = vmatpush2.msra.mxu0 0.0
    %1815 = vmatprep.subr.mxu0 0.0
    %1816 = vmatpush2.msra.mxu0 0.0
    %1817 = vmatprep.subr.mxu0 0.0
    %1818 = vmatpush2.msra.mxu0 0.0
    %1819 = vmatprep.mubr.f32.mxu0 0.0
    %1820 = vmatmul.mubr.f32.gmra.mxu0 %v717
    %v1821 = vpop.f32.mrf.mxu0
    %v1822 = vadd.f32 0.0, %v1821
    %v1823 = vpop.f32.mrf.mxu0
    %1824 = vdwg.mxu0
    %1826 = vrot.lane.b32.xlu0 %v1315, 96
    %v1827 = vpop.permute.xlu0 %1826
    %1829 = vmatprep.subr.mxu0 0.0
    %1830 = vmatpush1.msra.mxu0 0.0
    %1831 = vmatprep.subr.mxu0 0.0
    %1832 = vmatpush1.msra.mxu0 0.0
    %1833 = vmatprep.subr.mxu0 0.0
    %1834 = vmatpush1.msra.mxu0 0.0
    %1835 = vmatprep.subr.mxu0 0.0
    %1836 = vmatpush1.msra.mxu0 0.0
    %1837 = vmatprep.subr.mxu0 0.0
    %1838 = vmatpush1.msra.mxu0 0.0
    %1839 = vmatprep.subr.mxu0 0.0
    %1840 = vmatpush1.msra.mxu0 0.0
    %1841 = vmatprep.subr.mxu0 0.0
    %1842 = vmatpush1.msra.mxu0 0.0
    %1843 = vmatprep.subr.mxu0 0.0
    %1844 = vmatpush1.msra.mxu0 0.0
    %1845 = vmatprep.subr.mxu0 0.0
    %1846 = vmatpush1.msra.mxu0 0.0
    %1847 = vmatprep.subr.mxu0 0.0
    %1848 = vmatpush1.msra.mxu0 0.0
    %1849 = vmatprep.subr.mxu0 0.0
    %1850 = vmatpush1.msra.mxu0 0.0
    %1851 = vmatprep.subr.mxu0 0.0
    %1852 = vmatpush1.msra.mxu0 0.0
    %1853 = vmatprep.subr.mxu0 0.0
    %1854 = vmatpush1.msra.mxu0 0.0
    %1855 = vmatprep.subr.mxu0 0.0
    %1856 = vmatpush1.msra.mxu0 0.0
    %1857 = vmatprep.subr.mxu0 0.0
    %1858 = vmatpush1.msra.mxu0 0.0
    %1859 = vmatprep.subr.mxu0 0.0
    %1860 = vmatpush1.msra.mxu0 %v1827
    %1861 = vmatprep.subr.mxu0 0.0
    %1862 = vmatpush2.msra.mxu0 0.0
    %1863 = vmatprep.subr.mxu0 0.0
    %1864 = vmatpush2.msra.mxu0 0.0
    %1865 = vmatprep.subr.mxu0 0.0
    %1866 = vmatpush2.msra.mxu0 0.0
    %1867 = vmatprep.subr.mxu0 0.0
    %1868 = vmatpush2.msra.mxu0 0.0
    %1869 = vmatprep.subr.mxu0 0.0
    %1870 = vmatpush2.msra.mxu0 0.0
    %1871 = vmatprep.subr.mxu0 0.0
    %1872 = vmatpush2.msra.mxu0 0.0
    %1873 = vmatprep.subr.mxu0 0.0
    %1874 = vmatpush2.msra.mxu0 0.0
    %1875 = vmatprep.subr.mxu0 0.0
    %1876 = vmatpush2.msra.mxu0 0.0
    %1877 = vmatprep.subr.mxu0 0.0
    %1878 = vmatpush2.msra.mxu0 0.0
    %1879 = vmatprep.subr.mxu0 0.0
    %1880 = vmatpush2.msra.mxu0 0.0
    %1881 = vmatprep.subr.mxu0 0.0
    %1882 = vmatpush2.msra.mxu0 0.0
    %1883 = vmatprep.subr.mxu0 0.0
    %1884 = vmatpush2.msra.mxu0 0.0
    %1885 = vmatprep.subr.mxu0 0.0
    %1886 = vmatpush2.msra.mxu0 0.0
    %1887 = vmatprep.subr.mxu0 0.0
    %1888 = vmatpush2.msra.mxu0 0.0
    %1889 = vmatprep.subr.mxu0 0.0
    %1890 = vmatpush2.msra.mxu0 0.0
    %1891 = vmatprep.subr.mxu0 0.0
    %1892 = vmatpush2.msra.mxu0 0.0
    %1893 = vmatprep.mubr.f32.mxu0 0.0
    %1894 = vmatmul.mubr.f32.gmra.mxu0 %v794
    %v1895 = vpop.f32.mrf.mxu0
    %v1896 = vadd.f32 0.0, %v1895
    %v1897 = vpop.f32.mrf.mxu0
    %1898 = vdwg.mxu0
    %v1899 = vadd.f32 %v1674, %v867
    %v1900 = vadd.f32 %v1748, %v867
    %v1901 = vadd.f32 %v1822, %v867
    %v1902 = vadd.f32 %v1896, %v867
    %v1904 = vsel %vm153, %v1899, 0
    %v1907 = vsel %vm153, %v1900, 0
    %v1910 = vsel %vm153, %v1901, 0
    %v1913 = vsel %vm153, %v1902, 0
    %1915 = vmatprep.subr.mxu0 0.0
    %1916 = vmatpush1.msra.mxu0 0.0
    %1917 = vmatprep.subr.mxu0 0.0
    %1918 = vmatpush1.msra.mxu0 0.0
    %1919 = vmatprep.subr.mxu0 0.0
    %1920 = vmatpush1.msra.mxu0 0.0
    %1921 = vmatprep.subr.mxu0 0.0
    %1922 = vmatpush1.msra.mxu0 0.0
    %1923 = vmatprep.subr.mxu0 0.0
    %1924 = vmatpush1.msra.mxu0 0.0
    %1925 = vmatprep.subr.mxu0 0.0
    %1926 = vmatpush1.msra.mxu0 0.0
    %1927 = vmatprep.subr.mxu0 0.0
    %1928 = vmatpush1.msra.mxu0 0.0
    %1929 = vmatprep.subr.mxu0 0.0
    %1930 = vmatpush1.msra.mxu0 0.0
    %1931 = vmatprep.subr.mxu0 0.0
    %1932 = vmatpush1.msra.mxu0 0.0
    %1933 = vmatprep.subr.mxu0 0.0
    %1934 = vmatpush1.msra.mxu0 0.0
    %1935 = vmatprep.subr.mxu0 0.0
    %1936 = vmatpush1.msra.mxu0 0.0
    %1937 = vmatprep.subr.mxu0 0.0
    %1938 = vmatpush1.msra.mxu0 0.0
    %1939 = vmatprep.subr.mxu0 0.0
    %1940 = vmatpush1.msra.mxu0 %v128
    %1941 = vmatprep.subr.mxu0 0.0
    %1942 = vmatpush1.msra.mxu0 %v127
    %1943 = vmatprep.subr.mxu0 0.0
    %1944 = vmatpush1.msra.mxu0 %v126
    %1945 = vmatprep.subr.mxu0 0.0
    %1946 = vmatpush1.msra.mxu0 %v125
    %1947 = vmatprep.subr.mxu0 0.0
    %1948 = vmatpush2.msra.mxu0 0.0
    %1949 = vmatprep.subr.mxu0 0.0
    %1950 = vmatpush2.msra.mxu0 0.0
    %1951 = vmatprep.subr.mxu0 0.0
    %1952 = vmatpush2.msra.mxu0 0.0
    %1953 = vmatprep.subr.mxu0 0.0
    %1954 = vmatpush2.msra.mxu0 0.0
    %1955 = vmatprep.subr.mxu0 0.0
    %1956 = vmatpush2.msra.mxu0 0.0
    %1957 = vmatprep.subr.mxu0 0.0
    %1958 = vmatpush2.msra.mxu0 0.0
    %1959 = vmatprep.subr.mxu0 0.0
    %1960 = vmatpush2.msra.mxu0 0.0
    %1961 = vmatprep.subr.mxu0 0.0
    %1962 = vmatpush2.msra.mxu0 0.0
    %1963 = vmatprep.subr.mxu0 0.0
    %1964 = vmatpush2.msra.mxu0 0.0
    %1965 = vmatprep.subr.mxu0 0.0
    %1966 = vmatpush2.msra.mxu0 0.0
    %1967 = vmatprep.subr.mxu0 0.0
    %1968 = vmatpush2.msra.mxu0 0.0
    %1969 = vmatprep.subr.mxu0 0.0
    %1970 = vmatpush2.msra.mxu0 0.0
    %1971 = vmatprep.subr.mxu0 0.0
    %1972 = vmatpush2.msra.mxu0 0.0
    %1973 = vmatprep.subr.mxu0 0.0
    %1974 = vmatpush2.msra.mxu0 0.0
    %1975 = vmatprep.subr.mxu0 0.0
    %1976 = vmatpush2.msra.mxu0 0.0
    %1977 = vmatprep.subr.mxu0 0.0
    %1978 = vmatpush2.msra.mxu0 0.0
    %1979 = vmatprep.mubr.f32.mxu0 0.0
    %1980 = vmatmul.mubr.f32.gmra.mxu0 %v1904
    %v1981 = vpop.f32.mrf.mxu0
    %v1982 = vadd.f32 0.0, %v1981
    %v1983 = vpop.f32.mrf.mxu0
    %1984 = vmatprep.mubr.f32.mxu0 0.0
    %1985 = vmatmul.mubr.f32.gmra.mxu0 %v1907
    %v1986 = vpop.f32.mrf.mxu0
    %v1987 = vadd.f32 0.0, %v1986
    %v1988 = vpop.f32.mrf.mxu0
    %1989 = vmatprep.mubr.f32.mxu0 0.0
    %1990 = vmatmul.mubr.f32.gmra.mxu0 %v1910
    %v1991 = vpop.f32.mrf.mxu0
    %v1992 = vadd.f32 0.0, %v1991
    %v1993 = vpop.f32.mrf.mxu0
    %1994 = vmatprep.mubr.f32.mxu0 0.0
    %1995 = vmatmul.mubr.f32.gmra.mxu0 %v1913
    %v1996 = vpop.f32.mrf.mxu0
    %v1997 = vadd.f32 0.0, %v1996
    %v1998 = vpop.f32.mrf.mxu0
    %1999 = vdwg.mxu0
    %v2001 = vsel %vm153, %v1599, 0
    %v2004 = vsel %vm153, %v1600, 0
    %v2007 = vsel %vm153, %v1601, 0
    %v2010 = vsel %vm153, %v1602, 0
    %2012 = vmatprep.subr.mxu0 0.0
    %2013 = vmatpush1.msra.mxu0 0.0
    %2014 = vmatprep.subr.mxu0 0.0
    %2015 = vmatpush1.msra.mxu0 0.0
    %2016 = vmatprep.subr.mxu0 0.0
    %2017 = vmatpush1.msra.mxu0 0.0
    %2018 = vmatprep.subr.mxu0 0.0
    %2019 = vmatpush1.msra.mxu0 0.0
    %2020 = vmatprep.subr.mxu0 0.0
    %2021 = vmatpush1.msra.mxu0 0.0
    %2022 = vmatprep.subr.mxu0 0.0
    %2023 = vmatpush1.msra.mxu0 0.0
    %2024 = vmatprep.subr.mxu0 0.0
    %2025 = vmatpush1.msra.mxu0 0.0
    %2026 = vmatprep.subr.mxu0 0.0
    %2027 = vmatpush1.msra.mxu0 0.0
    %2028 = vmatprep.subr.mxu0 0.0
    %2029 = vmatpush1.msra.mxu0 0.0
    %2030 = vmatprep.subr.mxu0 0.0
    %2031 = vmatpush1.msra.mxu0 0.0
    %2032 = vmatprep.subr.mxu0 0.0
    %2033 = vmatpush1.msra.mxu0 0.0
    %2034 = vmatprep.subr.mxu0 0.0
    %2035 = vmatpush1.msra.mxu0 0.0
    %2036 = vmatprep.subr.mxu0 0.0
    %2037 = vmatpush1.msra.mxu0 %v124
    %2038 = vmatprep.subr.mxu0 0.0
    %2039 = vmatpush1.msra.mxu0 %v123
    %2040 = vmatprep.subr.mxu0 0.0
    %2041 = vmatpush1.msra.mxu0 %v122
    %2042 = vmatprep.subr.mxu0 0.0
    %2043 = vmatpush1.msra.mxu0 %v121
    %2044 = vmatprep.subr.mxu0 0.0
    %2045 = vmatpush2.msra.mxu0 0.0
    %2046 = vmatprep.subr.mxu0 0.0
    %2047 = vmatpush2.msra.mxu0 0.0
    %2048 = vmatprep.subr.mxu0 0.0
    %2049 = vmatpush2.msra.mxu0 0.0
    %2050 = vmatprep.subr.mxu0 0.0
    %2051 = vmatpush2.msra.mxu0 0.0
    %2052 = vmatprep.subr.mxu0 0.0
    %2053 = vmatpush2.msra.mxu0 0.0
    %2054 = vmatprep.subr.mxu0 0.0
    %2055 = vmatpush2.msra.mxu0 0.0
    %2056 = vmatprep.subr.mxu0 0.0
    %2057 = vmatpush2.msra.mxu0 0.0
    %2058 = vmatprep.subr.mxu0 0.0
    %2059 = vmatpush2.msra.mxu0 0.0
    %2060 = vmatprep.subr.mxu0 0.0
    %2061 = vmatpush2.msra.mxu0 0.0
    %2062 = vmatprep.subr.mxu0 0.0
    %2063 = vmatpush2.msra.mxu0 0.0
    %2064 = vmatprep.subr.mxu0 0.0
    %2065 = vmatpush2.msra.mxu0 0.0
    %2066 = vmatprep.subr.mxu0 0.0
    %2067 = vmatpush2.msra.mxu0 0.0
    %2068 = vmatprep.subr.mxu0 0.0
    %2069 = vmatpush2.msra.mxu0 0.0
    %2070 = vmatprep.subr.mxu0 0.0
    %2071 = vmatpush2.msra.mxu0 0.0
    %2072 = vmatprep.subr.mxu0 0.0
    %2073 = vmatpush2.msra.mxu0 0.0
    %2074 = vmatprep.subr.mxu0 0.0
    %2075 = vmatpush2.msra.mxu0 0.0
    %2076 = vmatprep.mubr.f32.mxu0 0.0
    %2077 = vmatmul.mubr.f32.gmra.mxu0 %v2001
    %v2078 = vpop.f32.mrf.mxu0
    %v2079 = vadd.f32 %v1982, %v2078
    %v2080 = vpop.f32.mrf.mxu0
    %2081 = vmatprep.mubr.f32.mxu0 0.0
    %2082 = vmatmul.mubr.f32.gmra.mxu0 %v2004
    %v2083 = vpop.f32.mrf.mxu0
    %v2084 = vadd.f32 %v1987, %v2083
    %v2085 = vpop.f32.mrf.mxu0
    %2086 = vmatprep.mubr.f32.mxu0 0.0
    %2087 = vmatmul.mubr.f32.gmra.mxu0 %v2007
    %v2088 = vpop.f32.mrf.mxu0
    %v2089 = vadd.f32 %v1992, %v2088
    %v2090 = vpop.f32.mrf.mxu0
    %2091 = vmatprep.mubr.f32.mxu0 0.0
    %2092 = vmatmul.mubr.f32.gmra.mxu0 %v2010
    %v2093 = vpop.f32.mrf.mxu0
    %v2094 = vadd.f32 %v1997, %v2093
    %v2095 = vpop.f32.mrf.mxu0
    %2096 = vdwg.mxu0
    %v2097 = vadd.f32 %v2079, %v1076
    %v2098 = vadd.f32 %v2084, %v1076
    %v2099 = vadd.f32 %v2089, %v1076
    %v2100 = vadd.f32 %v2094, %v1076
    %2101 = vrot.lane.b32.xlu0 %v1297, 64
    %v2102 = vpop.permute.xlu0 %2101
    %2103 = vrot.lane.b32.xlu0 %v1303, 64
    %v2104 = vpop.permute.xlu0 %2103
    %2105 = vrot.lane.b32.xlu0 %v1309, 64
    %v2106 = vpop.permute.xlu0 %2105
    %2107 = vrot.lane.b32.xlu0 %v1315, 64
    %v2108 = vpop.permute.xlu0 %2107
    %v2113 = vadd.f32 %v2097, %v2102
    %v2114 = vadd.f32 %v2098, %v2104
    %v2115 = vadd.f32 %v2099, %v2106
    %v2116 = vadd.f32 %v2100, %v2108
    %v2117 = vxor.u32 %v2113, 2147483648
    %v2118 = vxor.u32 %v2114, 2147483648
    %v2119 = vxor.u32 %v2115, 2147483648
    %v2120 = vxor.u32 %v2116, 2147483648
    %v2121 = vmul.f32 %v2117, 1.442695
    %v2122 = vpow.pop %v2121
    %v2123 = vmul.f32 %v2118, 1.442695
    %v2124 = vpow.pop %v2123
    %v2125 = vmul.f32 %v2119, 1.442695
    %v2126 = vpow.pop %v2125
    %v2127 = vmul.f32 %v2120, 1.442695
    %v2128 = vpow.pop %v2127
    %v2129 = vadd.f32 %v2122, 1.0
    %v2130 = vadd.f32 %v2124, 1.0
    %v2131 = vadd.f32 %v2126, 1.0
    %v2132 = vadd.f32 %v2128, 1.0
    %v2133 = vrcp.pop %v2129
    %v2134 = vmul.f32 1.0, %v2133
    %v2135 = vrcp.pop %v2130
    %v2136 = vmul.f32 1.0, %v2135
    %v2137 = vrcp.pop %v2131
    %v2138 = vmul.f32 1.0, %v2137
    %v2139 = vrcp.pop %v2132
    %v2140 = vmul.f32 1.0, %v2139
    %v2141 = vmul.f32 %v2134, %v1299
    %v2142 = vmul.f32 %v2136, %v1305
    %v2143 = vmul.f32 %v2138, %v1311
    %v2144 = vmul.f32 %v2140, %v1317
    %2149 = vrot.lane.b32.xlu0 %v2141, 64
    %v2150 = vpop.permute.xlu0 %2149
    %2151 = vrot.lane.b32.xlu0 %v2142, 64
    %v2152 = vpop.permute.xlu0 %2151
    %2153 = vrot.lane.b32.xlu0 %v2143, 64
    %v2154 = vpop.permute.xlu0 %2153
    %2155 = vrot.lane.b32.xlu0 %v2144, 64
    %v2156 = vpop.permute.xlu0 %2155
    %v2161 = vadd.f32 %v2097, %v2150
    %v2162 = vadd.f32 %v2098, %v2152
    %v2163 = vadd.f32 %v2099, %v2154
    %v2164 = vadd.f32 %v2100, %v2156
    %v2165 = vtanh.pop %v2161
    %v2166 = vtanh.pop %v2162
    %v2167 = vtanh.pop %v2163
    %v2168 = vtanh.pop %v2164
    %v2169 = vsub.f32 %v1206, %v2165
    %v2170 = vsub.f32 %v1207, %v2166
    %v2171 = vsub.f32 %v1208, %v2167
    %v2172 = vsub.f32 %v1209, %v2168
    %2177 = vrot.lane.b32.xlu0 %v2169, 96
    %v2178 = vpop.permute.xlu0 %2177
    %2179 = vrot.lane.b32.xlu0 %v2170, 96
    %v2180 = vpop.permute.xlu0 %2179
    %2181 = vrot.lane.b32.xlu0 %v2171, 96
    %v2182 = vpop.permute.xlu0 %2181
    %2183 = vrot.lane.b32.xlu0 %v2172, 96
    %v2184 = vpop.permute.xlu0 %2183
    %v2189 = vmul.f32 %v2134, %v2178
    %v2190 = vmul.f32 %v2136, %v2180
    %v2191 = vmul.f32 %v2138, %v2182
    %v2192 = vmul.f32 %v2140, %v2184
    %2197 = vrot.lane.b32.xlu0 %v2189, 32
    %v2198 = vpop.permute.xlu0 %2197
    %2199 = vrot.lane.b32.xlu0 %v2190, 32
    %v2200 = vpop.permute.xlu0 %2199
    %2201 = vrot.lane.b32.xlu0 %v2191, 32
    %v2202 = vpop.permute.xlu0 %2201
    %2203 = vrot.lane.b32.xlu0 %v2192, 32
    %v2204 = vpop.permute.xlu0 %2203
    %v2209 = vadd.f32 %v2165, %v2198
    %v2210 = vadd.f32 %v2166, %v2200
    %v2211 = vadd.f32 %v2167, %v2202
    %v2212 = vadd.f32 %v2168, %v2204
    %2217 = vrot.lane.b32.xlu0 %v2209, 64
    %v2218 = vpop.permute.xlu0 %2217
    %2219 = vrot.lane.b32.xlu0 %v2210, 64
    %v2220 = vpop.permute.xlu0 %2219
    %2221 = vrot.lane.b32.xlu0 %v2211, 64
    %v2222 = vpop.permute.xlu0 %2221
    %2223 = vrot.lane.b32.xlu0 %v2212, 64
    %v2224 = vpop.permute.xlu0 %2223
    %2229 = vst.msk [vmem:[#allocation13] sm:$0xff] %vm153, %v2218
    %2230 = vst.msk [vmem:[#allocation13 + $0x8] sm:$0xff] %vm153, %v2220
    %2231 = vst.msk [vmem:[#allocation13 + $0x10] sm:$0xff] %vm153, %v2222
    %2232 = vst.msk [vmem:[#allocation13 + $0x18] sm:$0xff] %vm153, %v2224
    // Predicated region
    $region58: #{tpu_custom_call.1} parent=1 // pred_check
      _
    $region59: #{tpu_custom_call.1} parent=1 // pred_check_branch
      %2234 = sbr.rel (0) target = $region61
    $region60: #{tpu_custom_call.1} parent=1 // pred_region
      %s2236 = ssub.s32 512, 512
      %2237 = vsyncadd [#allocation4], %s2236
      %s2238 = sshll.u32 [#allocation13], 4
      %s2239 = int_to_ptr.vmem [resolvable:$true] %s2238
      %2244 = dma.vmem_to_hbm [thread:$0]  %s2239, 512, %s8, [#allocation4], 128, 128, 8
    $region61: #{tpu_custom_call.1} parent=1 // pred_fallthru
      _
    // Predicated region
    $region62: #{tpu_custom_call.1} parent=1 // pred_check
      _
    $region63: #{tpu_custom_call.1} parent=1 // pred_check_branch
      %2246 = sbr.rel (0) target = $region65
    $region64: #{tpu_custom_call.1} parent=1 // pred_region
      %2247 = dma.done [#allocation4], 512
    $region65: #{tpu_custom_call.1} parent=1 // pred_fallthru
      _
    %2248 = vsyncpa [#allocation3], 1
    %2249 = vsyncpa [#allocation6], 1
    %2250 = vsyncpa [#allocation9], 1
    %2251 = vsyncpa [#allocation12], 1
    %2252 = vsyncpa [#allocation4], 1

</llo_original>
